<compile_context>
chip_gen: v5e
topology: v5e:2x2
jax: 0.10.0
libtpu: 0.0.40
codegen_flags: <defaults>
</compile_context>

<pallas_src>
import functools
import math

import jax
import jax.numpy as jnp
from jax.experimental import pallas as pl
from jax.experimental.pallas import tpu as pltpu


def _silu(v):
    return v * jax.nn.sigmoid(v)


# tap order matches HWIO reshape(9, Cin, Cout):  k = kh*3 + kw, (dh,dw) = (kh-1,kw-1)
_TAPS = tuple((dh, dw) for dh in (-1, 0, 1) for dw in (-1, 0, 1))


# ------------------------------ fused Pallas kernel ------------------------- #

def _fused_ddpm_kernel(x_ref, bias1_ref, mask_ref, w1_ref, w2_ref, w3_ref,
                       b2_ref, b3_ref, o_ref, *, W):
    """conv3x3 -> SiLU -> conv3x3 -> SiLU -> conv3x3 on a block of images.

    Activations are channels-first (C, N), N = batch_block*H*W: channels on
    sublanes, the flattened spatial dims of batch_block images concatenated on
    lanes (N is a multiple of 128 => every load, MXU operand and store is
    lane-dense).  Each 3x3 SAME conv is ONE GEMM: the 9 shifted+masked taps are
    stacked along sublanes into a (9*Cin, N) im2col operand and contracted
    against a pre-packed (Cout, 9*Cin) bf16 weight with f32 accumulation.
    """
    N = x_ref.shape[-1]
    masks = mask_ref[...]            # (9, N) f32 {0,1}: per-image SAME-padding validity

    def conv3x3(a, w_ref):
        # a: (Cin, N) f32;  w_ref: (Cout, 9*Cin) bf16  ->  (Cout, N) f32
        pieces = []
        for k, (dh, dw) in enumerate(_TAPS):
            s = dh * W + dw
            if s == 0:
                shifted = a                                   # centre tap: always valid
            else:
                # shifted[:, q] = a[:, q + s]; wrapped / out-of-image taps -> 0.
                # Valid taps never cross an image boundary (images are contiguous
                # HW-long lane segments), so roll over the whole lane block plus
                # the per-image mask reproduces SAME padding exactly.
                shifted = pltpu.roll(a, (-s) % N, axis=1) * masks[k:k + 1, :]
            pieces.append(shifted)
        stacked = jnp.concatenate(pieces, axis=0).astype(jnp.bfloat16)   # (9*Cin, N)
        return jnp.dot(w_ref[...], stacked, preferred_element_type=jnp.float32)

    x = x_ref[...]                                            # (Cpad, N) f32
    h1 = _silu(conv3x3(x, w1_ref) + bias1_ref[...])           # bias1 = b1 + temb(t_b)
    h2 = _silu(conv3x3(h1, w2_ref) + b2_ref[...])
    o_ref[...] = conv3x3(h2, w3_ref) + b3_ref[...]            # predicted noise


# ------------------------------- parameters -------------------------------- #

def init_params(key, in_ch=4, hidden=32, emb_dim=32):
    keys = jax.random.split(key, 5)

    def dense(k, fan_in, shape):
        return jax.random.normal(k, shape, jnp.float32) / jnp.sqrt(jnp.float32(fan_in))

    return dict(
        # time-embedding MLP
        tw1=dense(keys[0], emb_dim, (emb_dim, hidden)),
        tb1=jnp.zeros((1, hidden), jnp.float32),
        tw2=dense(keys[1], hidden, (hidden, hidden)),
        tb2=jnp.zeros((1, hidden), jnp.float32),
        # conv weights in HWIO layout (3, 3, Cin, Cout)
        w1=dense(keys[2], 9 * in_ch, (3, 3, in_ch, hidden)),
        b1=jnp.zeros((1, hidden), jnp.float32),
        w2=dense(keys[3], 9 * hidden, (3, 3, hidden, hidden)),
        b2=jnp.zeros((1, hidden), jnp.float32),
        w3=dense(keys[4], 9 * hidden, (3, 3, hidden, in_ch)),
        b3=jnp.zeros((1, in_ch), jnp.float32),
    )


def _timestep_embedding(t, dim):
    half = dim // 2
    freqs = jnp.exp(-math.log(10000.0) * jnp.arange(half, dtype=jnp.float32) / half)
    args = t.astype(jnp.float32)[:, None] * freqs[None, :]
    return jnp.concatenate([jnp.sin(args), jnp.cos(args)], axis=-1)  # (B, dim)


def _pick_batch_block(B, HW, max_lanes=8192):
    # Fold images into the lane axis to amortize per-grid-step overhead and widen
    # stores, but cap the lane block so the (9*hidden, N) bf16 im2col operand plus
    # double-buffered input/bias/output blocks stay well below every generation's
    # scoped VMEM default (v7x: 64 MiB physical / 32 MiB scoped; v5e/v6e: 128 MiB).
    return max(1, min(B, 8, max_lanes // HW))


def prepare_params(params, H, W, batch_block):
    """One-time packing of weights / masks so the per-call forward stays minimal."""
    C, hidden = params['w1'].shape[2], params['w1'].shape[3]
    Cpad = max(8, ((C + 7) // 8) * 8)       # pad channels to full (8,128) sublane tiles
    HW = H * W

    def pack(w_hwio, cin, cout, cin_pad, cout_pad):
        # HWIO (3,3,cin,cout) -> (cout_pad, 9*cin_pad) bf16, column index = k*cin_pad + ci
        w = w_hwio.reshape(9, cin, cout)
        w = jnp.pad(w, ((0, 0), (0, cin_pad - cin), (0, cout_pad - cout)))
        return jnp.transpose(w, (2, 0, 1)).reshape(cout_pad, 9 * cin_pad).astype(jnp.bfloat16)

    # SAME-padding tap-validity mask per within-image lane position, tiled across
    # the batch_block images folded into one lane block (also kills roll wrap-around).
    pos = jnp.arange(HW, dtype=jnp.int32)
    row, col = pos // W, pos % W
    m = jnp.stack([(row + dh >= 0) & (row + dh < H) & (col + dw >= 0) & (col + dw < W)
                   for dh, dw in _TAPS]).astype(jnp.float32)             # (9, HW)

    return dict(
        params,
        w1p=pack(params['w1'], C, hidden, Cpad, hidden),                 # (hid, 9*Cpad)
        w2p=pack(params['w2'], hidden, hidden, hidden, hidden),          # (hid, 9*hid)
        w3p=pack(params['w3'], hidden, C, hidden, Cpad),                 # (Cpad, 9*hid)
        b2c=params['b2'].reshape(hidden, 1).astype(jnp.float32),
        b3c=jnp.pad(params['b3'].reshape(C, 1), ((0, Cpad - C), (0, 0))).astype(jnp.float32),
        mask=jnp.tile(m, (1, batch_block)),                              # (9, batch_block*HW)
    )


# ------------------------------ forward (Pallas) ---------------------------- #

def diffusion_model_forward(prep, x_nchw, t):
    """Equivalent of DiffusionModelWrapper.forward: x [B,C,H,W], t [B] -> [B,C,H,W]."""
    B, C, H, W = x_nchw.shape
    HW = H * W
    hidden = prep['w2p'].shape[0]
    Cpad = prep['w3p'].shape[0]
    lane_block = prep['mask'].shape[1]
    b_block = lane_block // HW
    n_blocks = pl.cdiv(B, b_block)
    B_pad = n_blocks * b_block

    # Time-embedding MLP (tiny; stays in XLA), folded into the layer-1 bias and
    # pre-broadcast per image along its HW lanes -> kernel does one add.
    emb = _timestep_embedding(t, prep['tw1'].shape[0])
    temb = _silu(emb @ prep['tw1'] + prep['tb1']) @ prep['tw2'] + prep['tb2']   # (B, hid)
    bias_cols = jnp.pad(temb + prep['b1'], ((0, B_pad - B), (0, 0)))            # (B_pad, hid)
    bias1 = jnp.repeat(bias_cols.T, HW, axis=1)                                 # (hid, B_pad*HW)

    # NCHW -> channels-first lanes: (Cpad, B_pad*HW), images concatenated on lanes.
    x_f = jnp.pad(x_nchw.astype(jnp.float32).reshape(B, C, HW),
                  ((0, B_pad - B), (0, Cpad - C), (0, 0)))
    x_cl = jnp.transpose(x_f, (1, 0, 2)).reshape(Cpad, B_pad * HW)

    kernel = functools.partial(_fused_ddpm_kernel, W=W)
    out = pl.pallas_call(
        kernel,
        out_shape=jax.ShapeDtypeStruct((Cpad, B_pad * HW), jnp.float32),
        grid=(n_blocks,),
        in_specs=[
            pl.BlockSpec((Cpad, lane_block), lambda i: (0, i)),        # image block
            pl.BlockSpec((hidden, lane_block), lambda i: (0, i)),      # b1 + temb per image
            pl.BlockSpec((9, lane_block), lambda i: (0, 0)),           # SAME mask (resident)
            pl.BlockSpec((hidden, 9 * Cpad), lambda i: (0, 0)),        # w1 packed (resident)
            pl.BlockSpec((hidden, 9 * hidden), lambda i: (0, 0)),      # w2 packed (resident)
            pl.BlockSpec((Cpad, 9 * hidden), lambda i: (0, 0)),        # w3 packed (resident)
            pl.BlockSpec((hidden, 1), lambda i: (0, 0)),               # b2
            pl.BlockSpec((Cpad, 1), lambda i: (0, 0)),                 # b3
        ],
        out_specs=pl.BlockSpec((Cpad, lane_block), lambda i: (0, i)),  # lane-dense stores
        compiler_params=pltpu.CompilerParams(
            # On v7x, flip this axis to pltpu.CORE_PARALLEL (or use pl.core_map)
            # to shard batch blocks across the 2 TensorCores; "parallel" is the
            # portable default that lowers cleanly on every generation.
            dimension_semantics=("parallel",)),
    )(x_cl, bias1, prep['mask'], prep['w1p'], prep['w2p'], prep['w3p'],
      prep['b2c'], prep['b3c'])

    out = out.reshape(Cpad, B_pad, HW)[:C, :B]                  # drop channel/batch padding
    return jnp.transpose(out, (1, 0, 2)).reshape(B, C, H, W)


# ------------------------------ pure-JAX reference -------------------------- #

def reference_forward(params, x_nchw, t):
    x = jnp.transpose(x_nchw, (0, 2, 3, 1)).astype(jnp.float32)
    emb = _timestep_embedding(t, params['tw1'].shape[0])
    h = _silu(emb @ params['tw1'] + params['tb1'])
    temb = h @ params['tw2'] + params['tb2']

    def conv(v, w, b):
        y = jax.lax.conv_general_dilated(
            v, w, (1, 1), 'SAME', dimension_numbers=('NHWC', 'HWIO', 'NHWC'))
        return y + b.reshape(1, 1, 1, -1)

    h1 = _silu(conv(x, params['w1'], params['b1']) + temb[:, None, None, :])
    h2 = _silu(conv(h1, params['w2'], params['b2']))
    out = conv(h2, params['w3'], params['b3'])
    return jnp.transpose(out, (0, 3, 1, 2))


if __name__ == "__main__":
    key = jax.random.PRNGKey(0)
    kx, kt, kp = jax.random.split(key, 3)

    B, C, H, W = 2, 4, 16, 16
    x = jax.random.normal(kx, (B, C, H, W), jnp.float32)       # noisy images
    t = jax.random.randint(kt, (B,), 0, 1000)                  # timesteps

    params = init_params(kp, in_ch=C, hidden=32, emb_dim=32)
    prep = prepare_params(params, H, W, batch_block=_pick_batch_block(B, H * W))

    fwd = jax.jit(diffusion_model_forward)
    out = jax.block_until_ready(fwd(prep, x, t))
    assert out.shape == (B, C, H, W)

    ref = reference_forward(params, x, t)
    max_err = float(jnp.max(jnp.abs(out - ref)))
    # bf16 MXU operands (with f32 accumulation) vs. the pure-f32 XLA reference:
    # expected ~1e-3..1e-2 absolute error on O(1) activations.
    assert jnp.allclose(out, ref, atol=5e-2, rtol=5e-2), f"max_err={max_err}"

    print("KERNEL_OK")
</pallas_src>

<mosaic_0001>
module attributes {stable_mosaic.version = 11 : i64} {
  func.func @_fused_ddpm_kernel(%arg0: i32, %arg1: memref<8x512xf32, #tpu.memory_space<vmem>>, %arg2: memref<32x512xf32, #tpu.memory_space<vmem>>, %arg3: memref<9x512xf32, #tpu.memory_space<vmem>>, %arg4: memref<32x72xbf16, #tpu.memory_space<vmem>>, %arg5: memref<32x288xbf16, #tpu.memory_space<vmem>>, %arg6: memref<8x288xbf16, #tpu.memory_space<vmem>>, %arg7: memref<32x1xf32, #tpu.memory_space<vmem>>, %arg8: memref<8x1xf32, #tpu.memory_space<vmem>>, %arg9: memref<8x512xf32, #tpu.memory_space<vmem>>) attributes {dimension_semantics = [#tpu.dimension_semantics<parallel>], iteration_bounds = array<i64: 1>, scalar_prefetch = 0 : i64, scratch_operands = 0 : i64, tpu.core_type = #tpu.core_type<tc>, window_params = [{transform_indices = @transform_0, window_bounds = array<i64: 8, 512>}, {transform_indices = @transform_1, window_bounds = array<i64: 32, 512>}, {pipeline_mode = #tpu.pipeline_mode<synchronous>, transform_indices = @transform_2, window_bounds = array<i64: 9, 512>}, {pipeline_mode = #tpu.pipeline_mode<synchronous>, transform_indices = @transform_3, window_bounds = array<i64: 32, 72>}, {pipeline_mode = #tpu.pipeline_mode<synchronous>, transform_indices = @transform_4, window_bounds = array<i64: 32, 288>}, {pipeline_mode = #tpu.pipeline_mode<synchronous>, transform_indices = @transform_5, window_bounds = array<i64: 8, 288>}, {pipeline_mode = #tpu.pipeline_mode<synchronous>, transform_indices = @transform_6, window_bounds = array<i64: 32, 1>}, {pipeline_mode = #tpu.pipeline_mode<synchronous>, transform_indices = @transform_7, window_bounds = array<i64: 8, 1>}, {transform_indices = @transform_8, window_bounds = array<i64: 8, 512>}]} {
    %c0 = arith.constant 0 : index
    %c0_0 = arith.constant 0 : index
    %0 = vector.load %arg3[%c0, %c0_0] : memref<9x512xf32, #tpu.memory_space<vmem>>, vector<9x512xf32>
    %c0_1 = arith.constant 0 : index
    %c0_2 = arith.constant 0 : index
    %1 = vector.load %arg1[%c0_1, %c0_2] : memref<8x512xf32, #tpu.memory_space<vmem>>, vector<8x512xf32>
    %c17_i32 = arith.constant 17 : i32
    %2 = tpu.dynamic_rotate %1 by %c17_i32 dim 1 : vector<8x512xf32>, i32 -> vector<8x512xf32>
    %3 = vector.extract_strided_slice %0 {offsets = [0, 0], sizes = [1, 512], strides = [1, 1]} : vector<9x512xf32> to vector<1x512xf32>
    %4 = vector.broadcast %3 : vector<1x512xf32> to vector<8x512xf32>
    %5 = arith.mulf %2, %4 : vector<8x512xf32>
    %c16_i32 = arith.constant 16 : i32
    %6 = tpu.dynamic_rotate %1 by %c16_i32 dim 1 : vector<8x512xf32>, i32 -> vector<8x512xf32>
    %7 = vector.extract_strided_slice %0 {offsets = [1, 0], sizes = [1, 512], strides = [1, 1]} : vector<9x512xf32> to vector<1x512xf32>
    %8 = vector.broadcast %7 : vector<1x512xf32> to vector<8x512xf32>
    %9 = arith.mulf %6, %8 : vector<8x512xf32>
    %c15_i32 = arith.constant 15 : i32
    %10 = tpu.dynamic_rotate %1 by %c15_i32 dim 1 : vector<8x512xf32>, i32 -> vector<8x512xf32>
    %11 = vector.extract_strided_slice %0 {offsets = [2, 0], sizes = [1, 512], strides = [1, 1]} : vector<9x512xf32> to vector<1x512xf32>
    %12 = vector.broadcast %11 : vector<1x512xf32> to vector<8x512xf32>
    %13 = arith.mulf %10, %12 : vector<8x512xf32>
    %c1_i32 = arith.constant 1 : i32
    %14 = tpu.dynamic_rotate %1 by %c1_i32 dim 1 : vector<8x512xf32>, i32 -> vector<8x512xf32>
    %15 = vector.extract_strided_slice %0 {offsets = [3, 0], sizes = [1, 512], strides = [1, 1]} : vector<9x512xf32> to vector<1x512xf32>
    %16 = vector.broadcast %15 : vector<1x512xf32> to vector<8x512xf32>
    %17 = arith.mulf %14, %16 : vector<8x512xf32>
    %c511_i32 = arith.constant 511 : i32
    %18 = tpu.dynamic_rotate %1 by %c511_i32 dim 1 : vector<8x512xf32>, i32 -> vector<8x512xf32>
    %19 = vector.extract_strided_slice %0 {offsets = [5, 0], sizes = [1, 512], strides = [1, 1]} : vector<9x512xf32> to vector<1x512xf32>
    %20 = vector.broadcast %19 : vector<1x512xf32> to vector<8x512xf32>
    %21 = arith.mulf %18, %20 : vector<8x512xf32>
    %c497_i32 = arith.constant 497 : i32
    %22 = tpu.dynamic_rotate %1 by %c497_i32 dim 1 : vector<8x512xf32>, i32 -> vector<8x512xf32>
    %23 = vector.extract_strided_slice %0 {offsets = [6, 0], sizes = [1, 512], strides = [1, 1]} : vector<9x512xf32> to vector<1x512xf32>
    %24 = vector.broadcast %23 : vector<1x512xf32> to vector<8x512xf32>
    %25 = arith.mulf %22, %24 : vector<8x512xf32>
    %c496_i32 = arith.constant 496 : i32
    %26 = tpu.dynamic_rotate %1 by %c496_i32 dim 1 : vector<8x512xf32>, i32 -> vector<8x512xf32>
    %27 = vector.extract_strided_slice %0 {offsets = [7, 0], sizes = [1, 512], strides = [1, 1]} : vector<9x512xf32> to vector<1x512xf32>
    %28 = vector.broadcast %27 : vector<1x512xf32> to vector<8x512xf32>
    %29 = arith.mulf %26, %28 : vector<8x512xf32>
    %c495_i32 = arith.constant 495 : i32
    %30 = tpu.dynamic_rotate %1 by %c495_i32 dim 1 : vector<8x512xf32>, i32 -> vector<8x512xf32>
    %31 = vector.extract_strided_slice %0 {offsets = [8, 0], sizes = [1, 512], strides = [1, 1]} : vector<9x512xf32> to vector<1x512xf32>
    %32 = vector.broadcast %31 : vector<1x512xf32> to vector<8x512xf32>
    %33 = arith.mulf %30, %32 : vector<8x512xf32>
    %34 = tpu.concatenate %5, %9, %13, %17, %1, %21, %25, %29, %33 in 0 : vector<8x512xf32>, vector<8x512xf32>, vector<8x512xf32>, vector<8x512xf32>, vector<8x512xf32>, vector<8x512xf32>, vector<8x512xf32>, vector<8x512xf32>, vector<8x512xf32> -> vector<72x512xf32>
    %35 = arith.truncf %34 : vector<72x512xf32> to vector<72x512xbf16>
    %c0_3 = arith.constant 0 : index
    %c0_4 = arith.constant 0 : index
    %36 = vector.load %arg4[%c0_3, %c0_4] : memref<32x72xbf16, #tpu.memory_space<vmem>>, vector<32x72xbf16>
    %cst = arith.constant dense<0.000000e+00> : vector<32x512xf32>
    %37 = tpu.matmul %36, %35, %cst {dimension_numbers = #tpu.dot_dimension_numbers<[1], [0], [0], [1], [0, 0, 1, 1], [], []>} : vector<32x72xbf16>, vector<72x512xbf16>, vector<32x512xf32> -> vector<32x512xf32>
    %c0_5 = arith.constant 0 : index
    %c0_6 = arith.constant 0 : index
    %38 = vector.load %arg2[%c0_5, %c0_6] : memref<32x512xf32, #tpu.memory_space<vmem>>, vector<32x512xf32>
    %39 = arith.addf %37, %38 : vector<32x512xf32>
    %40 = arith.negf %39 : vector<32x512xf32>
    %41 = math.exp %40 : vector<32x512xf32>
    %cst_7 = arith.constant 1.000000e+00 : f32
    %42 = vector.broadcast %cst_7 : f32 to vector<32x512xf32>
    %43 = arith.addf %42, %41 : vector<32x512xf32>
    %44 = arith.divf %42, %43 : vector<32x512xf32>
    %45 = arith.mulf %39, %44 : vector<32x512xf32>
    %c17_i32_8 = arith.constant 17 : i32
    %46 = tpu.dynamic_rotate %45 by %c17_i32_8 dim 1 : vector<32x512xf32>, i32 -> vector<32x512xf32>
    %47 = vector.extract_strided_slice %0 {offsets = [0, 0], sizes = [1, 512], strides = [1, 1]} : vector<9x512xf32> to vector<1x512xf32>
    %48 = vector.broadcast %47 : vector<1x512xf32> to vector<32x512xf32>
    %49 = arith.mulf %46, %48 : vector<32x512xf32>
    %c16_i32_9 = arith.constant 16 : i32
    %50 = tpu.dynamic_rotate %45 by %c16_i32_9 dim 1 : vector<32x512xf32>, i32 -> vector<32x512xf32>
    %51 = vector.extract_strided_slice %0 {offsets = [1, 0], sizes = [1, 512], strides = [1, 1]} : vector<9x512xf32> to vector<1x512xf32>
    %52 = vector.broadcast %51 : vector<1x512xf32> to vector<32x512xf32>
    %53 = arith.mulf %50, %52 : vector<32x512xf32>
    %c15_i32_10 = arith.constant 15 : i32
    %54 = tpu.dynamic_rotate %45 by %c15_i32_10 dim 1 : vector<32x512xf32>, i32 -> vector<32x512xf32>
    %55 = vector.extract_strided_slice %0 {offsets = [2, 0], sizes = [1, 512], strides = [1, 1]} : vector<9x512xf32> to vector<1x512xf32>
    %56 = vector.broadcast %55 : vector<1x512xf32> to vector<32x512xf32>
    %57 = arith.mulf %54, %56 : vector<32x512xf32>
    %c1_i32_11 = arith.constant 1 : i32
    %58 = tpu.dynamic_rotate %45 by %c1_i32_11 dim 1 : vector<32x512xf32>, i32 -> vector<32x512xf32>
    %59 = vector.extract_strided_slice %0 {offsets = [3, 0], sizes = [1, 512], strides = [1, 1]} : vector<9x512xf32> to vector<1x512xf32>
    %60 = vector.broadcast %59 : vector<1x512xf32> to vector<32x512xf32>
    %61 = arith.mulf %58, %60 : vector<32x512xf32>
    %c511_i32_12 = arith.constant 511 : i32
    %62 = tpu.dynamic_rotate %45 by %c511_i32_12 dim 1 : vector<32x512xf32>, i32 -> vector<32x512xf32>
    %63 = vector.extract_strided_slice %0 {offsets = [5, 0], sizes = [1, 512], strides = [1, 1]} : vector<9x512xf32> to vector<1x512xf32>
    %64 = vector.broadcast %63 : vector<1x512xf32> to vector<32x512xf32>
    %65 = arith.mulf %62, %64 : vector<32x512xf32>
    %c497_i32_13 = arith.constant 497 : i32
    %66 = tpu.dynamic_rotate %45 by %c497_i32_13 dim 1 : vector<32x512xf32>, i32 -> vector<32x512xf32>
    %67 = vector.extract_strided_slice %0 {offsets = [6, 0], sizes = [1, 512], strides = [1, 1]} : vector<9x512xf32> to vector<1x512xf32>
    %68 = vector.broadcast %67 : vector<1x512xf32> to vector<32x512xf32>
    %69 = arith.mulf %66, %68 : vector<32x512xf32>
    %c496_i32_14 = arith.constant 496 : i32
    %70 = tpu.dynamic_rotate %45 by %c496_i32_14 dim 1 : vector<32x512xf32>, i32 -> vector<32x512xf32>
    %71 = vector.extract_strided_slice %0 {offsets = [7, 0], sizes = [1, 512], strides = [1, 1]} : vector<9x512xf32> to vector<1x512xf32>
    %72 = vector.broadcast %71 : vector<1x512xf32> to vector<32x512xf32>
    %73 = arith.mulf %70, %72 : vector<32x512xf32>
    %c495_i32_15 = arith.constant 495 : i32
    %74 = tpu.dynamic_rotate %45 by %c495_i32_15 dim 1 : vector<32x512xf32>, i32 -> vector<32x512xf32>
    %75 = vector.extract_strided_slice %0 {offsets = [8, 0], sizes = [1, 512], strides = [1, 1]} : vector<9x512xf32> to vector<1x512xf32>
    %76 = vector.broadcast %75 : vector<1x512xf32> to vector<32x512xf32>
    %77 = arith.mulf %74, %76 : vector<32x512xf32>
    %78 = tpu.concatenate %49, %53, %57, %61, %45, %65, %69, %73, %77 in 0 : vector<32x512xf32>, vector<32x512xf32>, vector<32x512xf32>, vector<32x512xf32>, vector<32x512xf32>, vector<32x512xf32>, vector<32x512xf32>, vector<32x512xf32>, vector<32x512xf32> -> vector<288x512xf32>
    %79 = arith.truncf %78 : vector<288x512xf32> to vector<288x512xbf16>
    %c0_16 = arith.constant 0 : index
    %c0_17 = arith.constant 0 : index
    %80 = vector.load %arg5[%c0_16, %c0_17] : memref<32x288xbf16, #tpu.memory_space<vmem>>, vector<32x288xbf16>
    %cst_18 = arith.constant dense<0.000000e+00> : vector<32x512xf32>
    %81 = tpu.matmul %80, %79, %cst_18 {dimension_numbers = #tpu.dot_dimension_numbers<[1], [0], [0], [1], [0, 0, 1, 1], [], []>} : vector<32x288xbf16>, vector<288x512xbf16>, vector<32x512xf32> -> vector<32x512xf32>
    %c0_19 = arith.constant 0 : index
    %c0_20 = arith.constant 0 : index
    %82 = vector.load %arg7[%c0_19, %c0_20] : memref<32x1xf32, #tpu.memory_space<vmem>>, vector<32x1xf32>
    %83 = vector.broadcast %82 : vector<32x1xf32> to vector<32x512xf32>
    %84 = arith.addf %81, %83 : vector<32x512xf32>
    %85 = arith.negf %84 : vector<32x512xf32>
    %86 = math.exp %85 : vector<32x512xf32>
    %cst_21 = arith.constant 1.000000e+00 : f32
    %87 = vector.broadcast %cst_21 : f32 to vector<32x512xf32>
    %88 = arith.addf %87, %86 : vector<32x512xf32>
    %89 = arith.divf %87, %88 : vector<32x512xf32>
    %90 = arith.mulf %84, %89 : vector<32x512xf32>
    %c17_i32_22 = arith.constant 17 : i32
    %91 = tpu.dynamic_rotate %90 by %c17_i32_22 dim 1 : vector<32x512xf32>, i32 -> vector<32x512xf32>
    %92 = vector.extract_strided_slice %0 {offsets = [0, 0], sizes = [1, 512], strides = [1, 1]} : vector<9x512xf32> to vector<1x512xf32>
    %93 = vector.broadcast %92 : vector<1x512xf32> to vector<32x512xf32>
    %94 = arith.mulf %91, %93 : vector<32x512xf32>
    %c16_i32_23 = arith.constant 16 : i32
    %95 = tpu.dynamic_rotate %90 by %c16_i32_23 dim 1 : vector<32x512xf32>, i32 -> vector<32x512xf32>
    %96 = vector.extract_strided_slice %0 {offsets = [1, 0], sizes = [1, 512], strides = [1, 1]} : vector<9x512xf32> to vector<1x512xf32>
    %97 = vector.broadcast %96 : vector<1x512xf32> to vector<32x512xf32>
    %98 = arith.mulf %95, %97 : vector<32x512xf32>
    %c15_i32_24 = arith.constant 15 : i32
    %99 = tpu.dynamic_rotate %90 by %c15_i32_24 dim 1 : vector<32x512xf32>, i32 -> vector<32x512xf32>
    %100 = vector.extract_strided_slice %0 {offsets = [2, 0], sizes = [1, 512], strides = [1, 1]} : vector<9x512xf32> to vector<1x512xf32>
    %101 = vector.broadcast %100 : vector<1x512xf32> to vector<32x512xf32>
    %102 = arith.mulf %99, %101 : vector<32x512xf32>
    %c1_i32_25 = arith.constant 1 : i32
    %103 = tpu.dynamic_rotate %90 by %c1_i32_25 dim 1 : vector<32x512xf32>, i32 -> vector<32x512xf32>
    %104 = vector.extract_strided_slice %0 {offsets = [3, 0], sizes = [1, 512], strides = [1, 1]} : vector<9x512xf32> to vector<1x512xf32>
    %105 = vector.broadcast %104 : vector<1x512xf32> to vector<32x512xf32>
    %106 = arith.mulf %103, %105 : vector<32x512xf32>
    %c511_i32_26 = arith.constant 511 : i32
    %107 = tpu.dynamic_rotate %90 by %c511_i32_26 dim 1 : vector<32x512xf32>, i32 -> vector<32x512xf32>
    %108 = vector.extract_strided_slice %0 {offsets = [5, 0], sizes = [1, 512], strides = [1, 1]} : vector<9x512xf32> to vector<1x512xf32>
    %109 = vector.broadcast %108 : vector<1x512xf32> to vector<32x512xf32>
    %110 = arith.mulf %107, %109 : vector<32x512xf32>
    %c497_i32_27 = arith.constant 497 : i32
    %111 = tpu.dynamic_rotate %90 by %c497_i32_27 dim 1 : vector<32x512xf32>, i32 -> vector<32x512xf32>
    %112 = vector.extract_strided_slice %0 {offsets = [6, 0], sizes = [1, 512], strides = [1, 1]} : vector<9x512xf32> to vector<1x512xf32>
    %113 = vector.broadcast %112 : vector<1x512xf32> to vector<32x512xf32>
    %114 = arith.mulf %111, %113 : vector<32x512xf32>
    %c496_i32_28 = arith.constant 496 : i32
    %115 = tpu.dynamic_rotate %90 by %c496_i32_28 dim 1 : vector<32x512xf32>, i32 -> vector<32x512xf32>
    %116 = vector.extract_strided_slice %0 {offsets = [7, 0], sizes = [1, 512], strides = [1, 1]} : vector<9x512xf32> to vector<1x512xf32>
    %117 = vector.broadcast %116 : vector<1x512xf32> to vector<32x512xf32>
    %118 = arith.mulf %115, %117 : vector<32x512xf32>
    %c495_i32_29 = arith.constant 495 : i32
    %119 = tpu.dynamic_rotate %90 by %c495_i32_29 dim 1 : vector<32x512xf32>, i32 -> vector<32x512xf32>
    %120 = vector.extract_strided_slice %0 {offsets = [8, 0], sizes = [1, 512], strides = [1, 1]} : vector<9x512xf32> to vector<1x512xf32>
    %121 = vector.broadcast %120 : vector<1x512xf32> to vector<32x512xf32>
    %122 = arith.mulf %119, %121 : vector<32x512xf32>
    %123 = tpu.concatenate %94, %98, %102, %106, %90, %110, %114, %118, %122 in 0 : vector<32x512xf32>, vector<32x512xf32>, vector<32x512xf32>, vector<32x512xf32>, vector<32x512xf32>, vector<32x512xf32>, vector<32x512xf32>, vector<32x512xf32>, vector<32x512xf32> -> vector<288x512xf32>
    %124 = arith.truncf %123 : vector<288x512xf32> to vector<288x512xbf16>
    %c0_30 = arith.constant 0 : index
    %c0_31 = arith.constant 0 : index
    %125 = vector.load %arg6[%c0_30, %c0_31] : memref<8x288xbf16, #tpu.memory_space<vmem>>, vector<8x288xbf16>
    %cst_32 = arith.constant dense<0.000000e+00> : vector<8x512xf32>
    %126 = tpu.matmul %125, %124, %cst_32 {dimension_numbers = #tpu.dot_dimension_numbers<[1], [0], [0], [1], [0, 0, 1, 1], [], []>} : vector<8x288xbf16>, vector<288x512xbf16>, vector<8x512xf32> -> vector<8x512xf32>
    %c0_33 = arith.constant 0 : index
    %c0_34 = arith.constant 0 : index
    %127 = vector.load %arg8[%c0_33, %c0_34] : memref<8x1xf32, #tpu.memory_space<vmem>>, vector<8x1xf32>
    %128 = vector.broadcast %127 : vector<8x1xf32> to vector<8x512xf32>
    %129 = arith.addf %126, %128 : vector<8x512xf32>
    %c0_35 = arith.constant 0 : index
    %c0_36 = arith.constant 0 : index
    %130 = vector.load %arg9[%c0_35, %c0_36] : memref<8x512xf32, #tpu.memory_space<vmem>>, vector<8x512xf32>
    tpu.vector_store %arg9[%c0_35, %c0_36], %129 {strides = array<i32>} : memref<8x512xf32, #tpu.memory_space<vmem>>, vector<8x512xf32>,
    return
  }
  func.func @transform_0(%arg0: i32) -> (i32, i32) {
    %c0_i32 = arith.constant 0 : i32
    %c0_i32_0 = arith.constant 0 : i32
    return %c0_i32, %arg0 : i32, i32
  }
  func.func @transform_1(%arg0: i32) -> (i32, i32) {
    %c0_i32 = arith.constant 0 : i32
    %c0_i32_0 = arith.constant 0 : i32
    return %c0_i32, %arg0 : i32, i32
  }
  func.func @transform_2(%arg0: i32) -> (i32, i32) {
    %c0_i32 = arith.constant 0 : i32
    %c0_i32_0 = arith.constant 0 : i32
    %c0_i32_1 = arith.constant 0 : i32
    return %c0_i32, %c0_i32_0 : i32, i32
  }
  func.func @transform_3(%arg0: i32) -> (i32, i32) {
    %c0_i32 = arith.constant 0 : i32
    %c0_i32_0 = arith.constant 0 : i32
    %c0_i32_1 = arith.constant 0 : i32
    return %c0_i32, %c0_i32_0 : i32, i32
  }
  func.func @transform_4(%arg0: i32) -> (i32, i32) {
    %c0_i32 = arith.constant 0 : i32
    %c0_i32_0 = arith.constant 0 : i32
    %c0_i32_1 = arith.constant 0 : i32
    return %c0_i32, %c0_i32_0 : i32, i32
  }
  func.func @transform_5(%arg0: i32) -> (i32, i32) {
    %c0_i32 = arith.constant 0 : i32
    %c0_i32_0 = arith.constant 0 : i32
    %c0_i32_1 = arith.constant 0 : i32
    return %c0_i32, %c0_i32_0 : i32, i32
  }
  func.func @transform_6(%arg0: i32) -> (i32, i32) {
    %c0_i32 = arith.constant 0 : i32
    %c0_i32_0 = arith.constant 0 : i32
    %c0_i32_1 = arith.constant 0 : i32
    return %c0_i32, %c0_i32_0 : i32, i32
  }
  func.func @transform_7(%arg0: i32) -> (i32, i32) {
    %c0_i32 = arith.constant 0 : i32
    %c0_i32_0 = arith.constant 0 : i32
    %c0_i32_1 = arith.constant 0 : i32
    return %c0_i32, %c0_i32_0 : i32, i32
  }
  func.func @transform_8(%arg0: i32) -> (i32, i32) {
    %c0_i32 = arith.constant 0 : i32
    %c0_i32_0 = arith.constant 0 : i32
    return %c0_i32, %arg0 : i32, i32
  }
}

</mosaic_0001>

<llo_original>
// kernel: diffusion_model_forward.1
$region0: #{diffusion_model_forward.1}
  #allocation0 [shape = 'u32[]', space=smem, size = 0x4, offset = 0x4, fixed_abs, tag = 'smem constant byte address 0x4 - core index']
  #allocation1 [shape = 'u32[72,128]{1,0:T(1,128)}', space=vmem, size = 0x9000, scoped, tag = 'internal scratch']
  %s0 = inlined_call_operand.vmem [shape: f32[8,512], index: 0, kind: input, shape index: {}]
  %s1 = inlined_call_operand.vmem [shape: f32[32,512], index: 1, kind: input, shape index: {}]
  %s2 = inlined_call_operand.vmem [shape: f32[9,512], index: 2, kind: input, shape index: {}]
  %s3 = inlined_call_operand.vmem [shape: bf16[32,72], index: 3, kind: input, shape index: {}]
  %s4 = inlined_call_operand.vmem [shape: bf16[32,288], index: 4, kind: input, shape index: {}]
  %s5 = inlined_call_operand.vmem [shape: bf16[8,288], index: 5, kind: input, shape index: {}]
  %s6 = inlined_call_operand.vmem [shape: f32[32,1], index: 6, kind: input, shape index: {}]
  %s7 = inlined_call_operand.vmem [shape: f32[8,1], index: 7, kind: input, shape index: {}]
  %s8 = inlined_call_operand.vmem [shape: f32[8,512], index: 8, kind: output, shape index: {}]
  %s9 = sld [smem:[#allocation0]]
  $region42: #{diffusion_model_forward.1} parent=0
    _
  %s11 = ssub.s32 1, %s9
  %s12 = scalar_select 0, %s11, %s9
  // Predicated region
  $region2: #{diffusion_model_forward.1} parent=0 // pred_check
    _
  $region3: #{diffusion_model_forward.1} parent=0 // pred_check_branch
    %14 = sbr.rel (0) target = $region5
  $region4: #{diffusion_model_forward.1} parent=0 // pred_region
    _
  $region5: #{diffusion_model_forward.1} parent=0 // pred_fallthru
    _
  // Predicated region
  $region6: #{diffusion_model_forward.1} parent=0 // pred_check
    _
  $region7: #{diffusion_model_forward.1} parent=0 // pred_check_branch
    %16 = sbr.rel (0) target = $region9
  $region8: #{diffusion_model_forward.1} parent=0 // pred_region
    _
  $region9: #{diffusion_model_forward.1} parent=0 // pred_fallthru
    _
  // Predicated region
  $region10: #{diffusion_model_forward.1} parent=0 // pred_check
    _
  $region11: #{diffusion_model_forward.1} parent=0 // pred_check_branch
    %18 = sbr.rel (0) target = $region13
  $region12: #{diffusion_model_forward.1} parent=0 // pred_region
    _
  $region13: #{diffusion_model_forward.1} parent=0 // pred_fallthru
    _
  // Predicated region
  $region14: #{diffusion_model_forward.1} parent=0 // pred_check
    _
  $region15: #{diffusion_model_forward.1} parent=0 // pred_check_branch
    %20 = sbr.rel (0) target = $region17
  $region16: #{diffusion_model_forward.1} parent=0 // pred_region
    _
  $region17: #{diffusion_model_forward.1} parent=0 // pred_fallthru
    _
  // Predicated region
  $region18: #{diffusion_model_forward.1} parent=0 // pred_check
    _
  $region19: #{diffusion_model_forward.1} parent=0 // pred_check_branch
    %22 = sbr.rel (0) target = $region21
  $region20: #{diffusion_model_forward.1} parent=0 // pred_region
    _
  $region21: #{diffusion_model_forward.1} parent=0 // pred_fallthru
    _
  // Predicated region
  $region22: #{diffusion_model_forward.1} parent=0 // pred_check
    _
  $region23: #{diffusion_model_forward.1} parent=0 // pred_check_branch
    %24 = sbr.rel (0) target = $region25
  $region24: #{diffusion_model_forward.1} parent=0 // pred_region
    _
  $region25: #{diffusion_model_forward.1} parent=0 // pred_fallthru
    _
  // Predicated region
  $region26: #{diffusion_model_forward.1} parent=0 // pred_check
    _
  $region27: #{diffusion_model_forward.1} parent=0 // pred_check_branch
    %26 = sbr.rel (0) target = $region29
  $region28: #{diffusion_model_forward.1} parent=0 // pred_region
    _
  $region29: #{diffusion_model_forward.1} parent=0 // pred_fallthru
    _
  // Predicated region
  $region30: #{diffusion_model_forward.1} parent=0 // pred_check
    _
  $region31: #{diffusion_model_forward.1} parent=0 // pred_check_branch
    %28 = sbr.rel (0) target = $region33
  $region32: #{diffusion_model_forward.1} parent=0 // pred_region
    _
  $region33: #{diffusion_model_forward.1} parent=0 // pred_fallthru
    _
  %v30 = vld [vmem:[%s2] sm:$0xff]
  %v31 = vld [vmem:[%s2 + $0x8] sm:$0xff]
  %v32 = vld [vmem:[%s2 + $0x10] sm:$0xff]
  %v33 = vld [vmem:[%s2 + $0x18] sm:$0xff]
  %v34 = vld [vmem:[%s2 + $0x20] sm:$0x1]
  %v35 = vld [vmem:[%s2 + $0x28] sm:$0x1]
  %v36 = vld [vmem:[%s2 + $0x30] sm:$0x1]
  %v37 = vld [vmem:[%s2 + $0x38] sm:$0x1]
  %v38 = vld [vmem:[%s0] sm:$0xff]
  %v39 = vld [vmem:[%s0 + $0x8] sm:$0xff]
  %v40 = vld [vmem:[%s0 + $0x10] sm:$0xff]
  %v41 = vld [vmem:[%s0 + $0x18] sm:$0xff]
  %42 = vrot.lane.b32.xlu0 %v38, 17
  %v43 = vpop.permute.xlu0 %42
  %44 = vrot.lane.b32.xlu0 %v39, 17
  %v45 = vpop.permute.xlu0 %44
  %46 = vrot.lane.b32.xlu0 %v40, 17
  %v47 = vpop.permute.xlu0 %46
  %48 = vrot.lane.b32.xlu0 %v41, 17
  %v49 = vpop.permute.xlu0 %48
  %v50 = vlaneseq
  %v51 = vand.u32 %v50, 127
  %vm52 = vcmp.lt.s32.totalorder %v51, 17
  %v53 = vsel %vm52, %v47, %v49
  %v54 = vsel %vm52, %v45, %v47
  %v55 = vsel %vm52, %v43, %v45
  %v56 = vsel %vm52, %v49, %v43
  %v57 = vperm.slane %v30, 0
  %v58 = vperm.slane %v31, 0
  %v59 = vperm.slane %v32, 0
  %v60 = vperm.slane %v33, 0
  %v61 = vmul.f32 %v56, %v57
  %v62 = vmul.f32 %v55, %v58
  %v63 = vmul.f32 %v54, %v59
  %v64 = vmul.f32 %v53, %v60
  %65 = vrot.lane.b32.xlu0 %v38, 16
  %v66 = vpop.permute.xlu0 %65
  %67 = vrot.lane.b32.xlu0 %v39, 16
  %v68 = vpop.permute.xlu0 %67
  %69 = vrot.lane.b32.xlu0 %v40, 16
  %v70 = vpop.permute.xlu0 %69
  %71 = vrot.lane.b32.xlu0 %v41, 16
  %v72 = vpop.permute.xlu0 %71
  %vm73 = vcmp.lt.s32.totalorder %v51, 16
  %v74 = vsel %vm73, %v70, %v72
  %v75 = vsel %vm73, %v68, %v70
  %v76 = vsel %vm73, %v66, %v68
  %v77 = vsel %vm73, %v72, %v66
  %v78 = vperm.slane %v30, 1
  %v79 = vperm.slane %v31, 1
  %v80 = vperm.slane %v32, 1
  %v81 = vperm.slane %v33, 1
  %v82 = vmul.f32 %v77, %v78
  %v83 = vmul.f32 %v76, %v79
  %v84 = vmul.f32 %v75, %v80
  %v85 = vmul.f32 %v74, %v81
  %86 = vrot.lane.b32.xlu0 %v38, 15
  %v87 = vpop.permute.xlu0 %86
  %88 = vrot.lane.b32.xlu0 %v39, 15
  %v89 = vpop.permute.xlu0 %88
  %90 = vrot.lane.b32.xlu0 %v40, 15
  %v91 = vpop.permute.xlu0 %90
  %92 = vrot.lane.b32.xlu0 %v41, 15
  %v93 = vpop.permute.xlu0 %92
  %vm94 = vcmp.lt.s32.totalorder %v51, 15
  %v95 = vsel %vm94, %v91, %v93
  %v96 = vsel %vm94, %v89, %v91
  %v97 = vsel %vm94, %v87, %v89
  %v98 = vsel %vm94, %v93, %v87
  %v99 = vperm.slane %v30, 2
  %v100 = vperm.slane %v31, 2
  %v101 = vperm.slane %v32, 2
  %v102 = vperm.slane %v33, 2
  %v103 = vmul.f32 %v98, %v99
  %v104 = vmul.f32 %v97, %v100
  %v105 = vmul.f32 %v96, %v101
  %v106 = vmul.f32 %v95, %v102
  %107 = vrot.lane.b32.xlu0 %v38, 1
  %v108 = vpop.permute.xlu0 %107
  %109 = vrot.lane.b32.xlu0 %v39, 1
  %v110 = vpop.permute.xlu0 %109
  %111 = vrot.lane.b32.xlu0 %v40, 1
  %v112 = vpop.permute.xlu0 %111
  %113 = vrot.lane.b32.xlu0 %v41, 1
  %v114 = vpop.permute.xlu0 %113
  %vm115 = vcmp.lt.s32.totalorder %v51, 1
  %v116 = vsel %vm115, %v112, %v114
  %v117 = vsel %vm115, %v110, %v112
  %v118 = vsel %vm115, %v108, %v110
  %v119 = vsel %vm115, %v114, %v108
  %v120 = vperm.slane %v30, 3
  %v121 = vperm.slane %v31, 3
  %v122 = vperm.slane %v32, 3
  %v123 = vperm.slane %v33, 3
  %v124 = vmul.f32 %v119, %v120
  %v125 = vmul.f32 %v118, %v121
  %v126 = vmul.f32 %v117, %v122
  %v127 = vmul.f32 %v116, %v123
  %128 = vrot.lane.b32.xlu0 %v38, 127
  %v129 = vpop.permute.xlu0 %128
  %130 = vrot.lane.b32.xlu0 %v39, 127
  %v131 = vpop.permute.xlu0 %130
  %132 = vrot.lane.b32.xlu0 %v40, 127
  %v133 = vpop.permute.xlu0 %132
  %134 = vrot.lane.b32.xlu0 %v41, 127
  %v135 = vpop.permute.xlu0 %134
  %vm136 = vcmp.lt.s32.totalorder %v51, 127
  %v137 = vsel %vm136, %v133, %v135
  %v138 = vsel %vm136, %v131, %v133
  %v139 = vsel %vm136, %v129, %v131
  %v140 = vsel %vm136, %v135, %v129
  %v141 = vperm.slane %v30, 5
  %v142 = vperm.slane %v31, 5
  %v143 = vperm.slane %v32, 5
  %v144 = vperm.slane %v33, 5
  %v145 = vmul.f32 %v139, %v141
  %v146 = vmul.f32 %v138, %v142
  %v147 = vmul.f32 %v137, %v143
  %v148 = vmul.f32 %v140, %v144
  %149 = vrot.lane.b32.xlu0 %v38, 113
  %v150 = vpop.permute.xlu0 %149
  %151 = vrot.lane.b32.xlu0 %v39, 113
  %v152 = vpop.permute.xlu0 %151
  %153 = vrot.lane.b32.xlu0 %v40, 113
  %v154 = vpop.permute.xlu0 %153
  %155 = vrot.lane.b32.xlu0 %v41, 113
  %v156 = vpop.permute.xlu0 %155
  %vm157 = vcmp.lt.s32.totalorder %v51, 113
  %v158 = vsel %vm157, %v154, %v156
  %v159 = vsel %vm157, %v152, %v154
  %v160 = vsel %vm157, %v150, %v152
  %v161 = vsel %vm157, %v156, %v150
  %v162 = vperm.slane %v30, 6
  %v163 = vperm.slane %v31, 6
  %v164 = vperm.slane %v32, 6
  %v165 = vperm.slane %v33, 6
  %v166 = vmul.f32 %v160, %v162
  %v167 = vmul.f32 %v159, %v163
  %v168 = vmul.f32 %v158, %v164
  %v169 = vmul.f32 %v161, %v165
  %170 = vrot.lane.b32.xlu0 %v38, 112
  %v171 = vpop.permute.xlu0 %170
  %172 = vrot.lane.b32.xlu0 %v39, 112
  %v173 = vpop.permute.xlu0 %172
  %174 = vrot.lane.b32.xlu0 %v40, 112
  %v175 = vpop.permute.xlu0 %174
  %176 = vrot.lane.b32.xlu0 %v41, 112
  %v177 = vpop.permute.xlu0 %176
  %vm178 = vcmp.lt.s32.totalorder %v51, 112
  %v179 = vsel %vm178, %v175, %v177
  %v180 = vsel %vm178, %v173, %v175
  %v181 = vsel %vm178, %v171, %v173
  %v182 = vsel %vm178, %v177, %v171
  %v183 = vperm.slane %v30, 7
  %v184 = vperm.slane %v31, 7
  %v185 = vperm.slane %v32, 7
  %v186 = vperm.slane %v33, 7
  %v187 = vmul.f32 %v181, %v183
  %v188 = vmul.f32 %v180, %v184
  %v189 = vmul.f32 %v179, %v185
  %v190 = vmul.f32 %v182, %v186
  %191 = vrot.lane.b32.xlu0 %v38, 111
  %v192 = vpop.permute.xlu0 %191
  %193 = vrot.lane.b32.xlu0 %v39, 111
  %v194 = vpop.permute.xlu0 %193
  %195 = vrot.lane.b32.xlu0 %v40, 111
  %v196 = vpop.permute.xlu0 %195
  %197 = vrot.lane.b32.xlu0 %v41, 111
  %v198 = vpop.permute.xlu0 %197
  %vm199 = vcmp.lt.s32.totalorder %v51, 111
  %v200 = vsel %vm199, %v196, %v198
  %v201 = vsel %vm199, %v194, %v196
  %v202 = vsel %vm199, %v192, %v194
  %v203 = vsel %vm199, %v198, %v192
  %v204 = vperm.slane %v34, 0
  %v205 = vperm.slane %v35, 0
  %v206 = vperm.slane %v36, 0
  %v207 = vperm.slane %v37, 0
  %v208 = vmul.f32 %v202, %v204
  %v209 = vmul.f32 %v201, %v205
  %v210 = vmul.f32 %v200, %v206
  %v211 = vmul.f32 %v203, %v207
  %v212 = vpack.c.bf16 %v82, %v61
  %v213 = vpack.c.bf16 %v83, %v62
  %v214 = vpack.c.bf16 %v84, %v63
  %v215 = vpack.c.bf16 %v85, %v64
  %v216 = vpack.c.bf16 %v124, %v103
  %v217 = vpack.c.bf16 %v125, %v104
  %v218 = vpack.c.bf16 %v126, %v105
  %v219 = vpack.c.bf16 %v127, %v106
  %v220 = vpack.c.bf16 %v145, %v38
  %v221 = vpack.c.bf16 %v146, %v39
  %v222 = vpack.c.bf16 %v147, %v40
  %v223 = vpack.c.bf16 %v148, %v41
  %v224 = vpack.c.bf16 %v187, %v166
  %v225 = vpack.c.bf16 %v188, %v167
  %v226 = vpack.c.bf16 %v189, %v168
  %v227 = vpack.c.bf16 %v190, %v169
  %v228 = vpack.c.bf16 %v208, %v208
  %v229 = vpack.c.bf16 %v209, %v209
  %v230 = vpack.c.bf16 %v210, %v210
  %v231 = vpack.c.bf16 %v211, %v211
  %v232 = vld [vmem:[%s3] sm:$0xf]
  %v233 = vld [vmem:[%s3 + $0x4] sm:$0xf]
  %v234 = vld [vmem:[%s3 + $0x8] sm:$0xf]
  %v235 = vld [vmem:[%s3 + $0xc] sm:$0xf]
  %v236 = vld [vmem:[%s1] sm:$0xff]
  %v237 = vld [vmem:[%s1 + $0x8] sm:$0xff]
  %v238 = vld [vmem:[%s1 + $0x10] sm:$0xff]
  %v239 = vld [vmem:[%s1 + $0x18] sm:$0xff]
  %v240 = vld [vmem:[%s1 + $0x20] sm:$0xff]
  %v241 = vld [vmem:[%s1 + $0x28] sm:$0xff]
  %v242 = vld [vmem:[%s1 + $0x30] sm:$0xff]
  %v243 = vld [vmem:[%s1 + $0x38] sm:$0xff]
  %v244 = vld [vmem:[%s1 + $0x40] sm:$0xff]
  %v245 = vld [vmem:[%s1 + $0x48] sm:$0xff]
  %v246 = vld [vmem:[%s1 + $0x50] sm:$0xff]
  %v247 = vld [vmem:[%s1 + $0x58] sm:$0xff]
  %v248 = vld [vmem:[%s1 + $0x60] sm:$0xff]
  %v249 = vld [vmem:[%s1 + $0x68] sm:$0xff]
  %v250 = vld [vmem:[%s1 + $0x70] sm:$0xff]
  %v251 = vld [vmem:[%s1 + $0x78] sm:$0xff]
  %v256 = vunpack.c.l.b16 %v232
  %v257 = vunpack.c.l.b16 %v233
  %v258 = vunpack.c.l.b16 %v234
  %v259 = vunpack.c.l.b16 %v235
  %v260 = vpack.c.b16 %v257, %v256
  %v261 = vpack.c.b16 %v259, %v258
  %vm262 = vcmask 588800
  %v264 = vsel %vm262, %v260, 0
  %v267 = vsel %vm262, %v261, 0
  %vm269 = vcmask 1043456
  %v271 = vsel %vm269, %v228, 0
  %v274 = vsel %vm269, %v229, 0
  %v277 = vsel %vm269, %v230, 0
  %v280 = vsel %vm269, %v231, 0
  %282 = vmatpush.bf16.msra.mxu0 0
  %283 = vmatpush.bf16.msra.mxu0 0
  %284 = vmatpush.bf16.msra.mxu0 0
  %285 = vmatpush.bf16.msra.mxu0 %v271
  %286 = vmatpush.bf16.msra.mxu0 %v224
  %287 = vmatpush.bf16.msra.mxu0 %v220
  %288 = vmatpush.bf16.msra.mxu0 %v216
  %289 = vmatpush.bf16.msra.mxu0 %v212
  %290 = vmatmul.bf16.gmra.mxu0 %v264
  %v291 = vpop.f32.mrf.mxu0
  %v292 = vadd.f32 %v236, %v291
  %v293 = vpop.f32.mrf.mxu0
  %v294 = vadd.f32 %v240, %v293
  %295 = vmatmul.bf16.gmra.mxu0 %v267
  %v296 = vpop.f32.mrf.mxu0
  %v297 = vadd.f32 %v244, %v296
  %v298 = vpop.f32.mrf.mxu0
  %v299 = vadd.f32 %v248, %v298
  %300 = vdwg.mxu0
  %301 = vmatpush.bf16.msra.mxu0 0
  %302 = vmatpush.bf16.msra.mxu0 0
  %303 = vmatpush.bf16.msra.mxu0 0
  %304 = vmatpush.bf16.msra.mxu0 %v274
  %305 = vmatpush.bf16.msra.mxu0 %v225
  %306 = vmatpush.bf16.msra.mxu0 %v221
  %307 = vmatpush.bf16.msra.mxu0 %v217
  %308 = vmatpush.bf16.msra.mxu0 %v213
  %309 = vmatmul.bf16.gmra.mxu0 %v264
  %v310 = vpop.f32.mrf.mxu0
  %v311 = vadd.f32 %v237, %v310
  %v312 = vpop.f32.mrf.mxu0
  %v313 = vadd.f32 %v241, %v312
  %314 = vmatmul.bf16.gmra.mxu0 %v267
  %v315 = vpop.f32.mrf.mxu0
  %v316 = vadd.f32 %v245, %v315
  %v317 = vpop.f32.mrf.mxu0
  %v318 = vadd.f32 %v249, %v317
  %319 = vdwg.mxu0
  %320 = vmatpush.bf16.msra.mxu0 0
  %321 = vmatpush.bf16.msra.mxu0 0
  %322 = vmatpush.bf16.msra.mxu0 0
  %323 = vmatpush.bf16.msra.mxu0 %v277
  %324 = vmatpush.bf16.msra.mxu0 %v226
  %325 = vmatpush.bf16.msra.mxu0 %v222
  %326 = vmatpush.bf16.msra.mxu0 %v218
  %327 = vmatpush.bf16.msra.mxu0 %v214
  %328 = vmatmul.bf16.gmra.mxu0 %v264
  %v329 = vpop.f32.mrf.mxu0
  %v330 = vadd.f32 %v238, %v329
  %v331 = vpop.f32.mrf.mxu0
  %v332 = vadd.f32 %v242, %v331
  %333 = vmatmul.bf16.gmra.mxu0 %v267
  %v334 = vpop.f32.mrf.mxu0
  %v335 = vadd.f32 %v246, %v334
  %v336 = vpop.f32.mrf.mxu0
  %v337 = vadd.f32 %v250, %v336
  %338 = vdwg.mxu0
  %339 = vmatpush.bf16.msra.mxu0 0
  %340 = vmatpush.bf16.msra.mxu0 0
  %341 = vmatpush.bf16.msra.mxu0 0
  %342 = vmatpush.bf16.msra.mxu0 %v280
  %343 = vmatpush.bf16.msra.mxu0 %v227
  %344 = vmatpush.bf16.msra.mxu0 %v223
  %345 = vmatpush.bf16.msra.mxu0 %v219
  %346 = vmatpush.bf16.msra.mxu0 %v215
  %347 = vmatmul.bf16.gmra.mxu0 %v264
  %v348 = vpop.f32.mrf.mxu0
  %v349 = vadd.f32 %v239, %v348
  %v350 = vpop.f32.mrf.mxu0
  %v351 = vadd.f32 %v243, %v350
  %352 = vmatmul.bf16.gmra.mxu0 %v267
  %v353 = vpop.f32.mrf.mxu0
  %v354 = vadd.f32 %v247, %v353
  %v355 = vpop.f32.mrf.mxu0
  %v356 = vadd.f32 %v251, %v355
  %357 = vdwg.mxu0
  %v358 = vxor.u32 %v292, 2147483648
  %v359 = vxor.u32 %v311, 2147483648
  %v360 = vxor.u32 %v330, 2147483648
  %v361 = vxor.u32 %v349, 2147483648
  %v362 = vxor.u32 %v294, 2147483648
  %v363 = vxor.u32 %v313, 2147483648
  %v364 = vxor.u32 %v332, 2147483648
  %v365 = vxor.u32 %v351, 2147483648
  %v366 = vxor.u32 %v297, 2147483648
  %v367 = vxor.u32 %v316, 2147483648
  %v368 = vxor.u32 %v335, 2147483648
  %v369 = vxor.u32 %v354, 2147483648
  %v370 = vxor.u32 %v299, 2147483648
  %v371 = vxor.u32 %v318, 2147483648
  %v372 = vxor.u32 %v337, 2147483648
  %v373 = vxor.u32 %v356, 2147483648
  %v374 = vmul.f32 %v358, 1.442695
  %v375 = vpow.pop %v374
  %v376 = vmul.f32 %v359, 1.442695
  %v377 = vpow.pop %v376
  %v378 = vmul.f32 %v360, 1.442695
  %v379 = vpow.pop %v378
  %v380 = vmul.f32 %v361, 1.442695
  %v381 = vpow.pop %v380
  %v382 = vmul.f32 %v362, 1.442695
  %v383 = vpow.pop %v382
  %v384 = vmul.f32 %v363, 1.442695
  %v385 = vpow.pop %v384
  %v386 = vmul.f32 %v364, 1.442695
  %v387 = vpow.pop %v386
  %v388 = vmul.f32 %v365, 1.442695
  %v389 = vpow.pop %v388
  %v390 = vmul.f32 %v366, 1.442695
  %v391 = vpow.pop %v390
  %v392 = vmul.f32 %v367, 1.442695
  %v393 = vpow.pop %v392
  %v394 = vmul.f32 %v368, 1.442695
  %v395 = vpow.pop %v394
  %v396 = vmul.f32 %v369, 1.442695
  %v397 = vpow.pop %v396
  %v398 = vmul.f32 %v370, 1.442695
  %v399 = vpow.pop %v398
  %v400 = vmul.f32 %v371, 1.442695
  %v401 = vpow.pop %v400
  %v402 = vmul.f32 %v372, 1.442695
  %v403 = vpow.pop %v402
  %v404 = vmul.f32 %v373, 1.442695
  %v405 = vpow.pop %v404
  %v406 = vadd.f32 %v375, 1.0
  %v407 = vadd.f32 %v377, 1.0
  %v408 = vadd.f32 %v379, 1.0
  %v409 = vadd.f32 %v381, 1.0
  %v410 = vadd.f32 %v383, 1.0
  %v411 = vadd.f32 %v385, 1.0
  %v412 = vadd.f32 %v387, 1.0
  %v413 = vadd.f32 %v389, 1.0
  %v414 = vadd.f32 %v391, 1.0
  %v415 = vadd.f32 %v393, 1.0
  %v416 = vadd.f32 %v395, 1.0
  %v417 = vadd.f32 %v397, 1.0
  %v418 = vadd.f32 %v399, 1.0
  %v419 = vadd.f32 %v401, 1.0
  %v420 = vadd.f32 %v403, 1.0
  %v421 = vadd.f32 %v405, 1.0
  %v422 = vrcp.pop %v406
  %v423 = vmul.f32 %v406, %v422
  %v424 = vsub.f32 1.0, %v423
  %v425 = vmul.f32 %v422, %v424
  %v426 = vadd.f32 %v422, %v425
  %vm427 = vweird.f32 %v406
  %vm428 = vweird.f32 %v422
  %vm429 = vmor %vm427, %vm428
  %v430 = vsel %vm429, %v422, %v426
  %v431 = vand.u32 2147483647, %v406
  %vm432 = vcmp.eq.f32.partialorder %v431, 8.507059e+37
  %v433 = vand.u32 %v406, 2147483648
  %v434 = vor.u32 1.1754944e-38, %v433
  %v435 = vsel %vm432, %v434, %v430
  %v436 = vmul.f32 1.0, %v435
  %v437 = vrcp.pop %v407
  %v438 = vmul.f32 %v407, %v437
  %v439 = vsub.f32 1.0, %v438
  %v440 = vmul.f32 %v437, %v439
  %v441 = vadd.f32 %v437, %v440
  %vm442 = vweird.f32 %v407
  %vm443 = vweird.f32 %v437
  %vm444 = vmor %vm442, %vm443
  %v445 = vsel %vm444, %v437, %v441
  %v446 = vand.u32 2147483647, %v407
  %vm447 = vcmp.eq.f32.partialorder %v446, 8.507059e+37
  %v448 = vand.u32 %v407, 2147483648
  %v449 = vor.u32 1.1754944e-38, %v448
  %v450 = vsel %vm447, %v449, %v445
  %v451 = vmul.f32 1.0, %v450
  %v452 = vrcp.pop %v408
  %v453 = vmul.f32 %v408, %v452
  %v454 = vsub.f32 1.0, %v453
  %v455 = vmul.f32 %v452, %v454
  %v456 = vadd.f32 %v452, %v455
  %vm457 = vweird.f32 %v408
  %vm458 = vweird.f32 %v452
  %vm459 = vmor %vm457, %vm458
  %v460 = vsel %vm459, %v452, %v456
  %v461 = vand.u32 2147483647, %v408
  %vm462 = vcmp.eq.f32.partialorder %v461, 8.507059e+37
  %v463 = vand.u32 %v408, 2147483648
  %v464 = vor.u32 1.1754944e-38, %v463
  %v465 = vsel %vm462, %v464, %v460
  %v466 = vmul.f32 1.0, %v465
  %v467 = vrcp.pop %v409
  %v468 = vmul.f32 %v409, %v467
  %v469 = vsub.f32 1.0, %v468
  %v470 = vmul.f32 %v467, %v469
  %v471 = vadd.f32 %v467, %v470
  %vm472 = vweird.f32 %v409
  %vm473 = vweird.f32 %v467
  %vm474 = vmor %vm472, %vm473
  %v475 = vsel %vm474, %v467, %v471
  %v476 = vand.u32 2147483647, %v409
  %vm477 = vcmp.eq.f32.partialorder %v476, 8.507059e+37
  %v478 = vand.u32 %v409, 2147483648
  %v479 = vor.u32 1.1754944e-38, %v478
  %v480 = vsel %vm477, %v479, %v475
  %v481 = vmul.f32 1.0, %v480
  %v482 = vrcp.pop %v410
  %v483 = vmul.f32 %v410, %v482
  %v484 = vsub.f32 1.0, %v483
  %v485 = vmul.f32 %v482, %v484
  %v486 = vadd.f32 %v482, %v485
  %vm487 = vweird.f32 %v410
  %vm488 = vweird.f32 %v482
  %vm489 = vmor %vm487, %vm488
  %v490 = vsel %vm489, %v482, %v486
  %v491 = vand.u32 2147483647, %v410
  %vm492 = vcmp.eq.f32.partialorder %v491, 8.507059e+37
  %v493 = vand.u32 %v410, 2147483648
  %v494 = vor.u32 1.1754944e-38, %v493
  %v495 = vsel %vm492, %v494, %v490
  %v496 = vmul.f32 1.0, %v495
  %v497 = vrcp.pop %v411
  %v498 = vmul.f32 %v411, %v497
  %v499 = vsub.f32 1.0, %v498
  %v500 = vmul.f32 %v497, %v499
  %v501 = vadd.f32 %v497, %v500
  %vm502 = vweird.f32 %v411
  %vm503 = vweird.f32 %v497
  %vm504 = vmor %vm502, %vm503
  %v505 = vsel %vm504, %v497, %v501
  %v506 = vand.u32 2147483647, %v411
  %vm507 = vcmp.eq.f32.partialorder %v506, 8.507059e+37
  %v508 = vand.u32 %v411, 2147483648
  %v509 = vor.u32 1.1754944e-38, %v508
  %v510 = vsel %vm507, %v509, %v505
  %v511 = vmul.f32 1.0, %v510
  %v512 = vrcp.pop %v412
  %v513 = vmul.f32 %v412, %v512
  %v514 = vsub.f32 1.0, %v513
  %v515 = vmul.f32 %v512, %v514
  %v516 = vadd.f32 %v512, %v515
  %vm517 = vweird.f32 %v412
  %vm518 = vweird.f32 %v512
  %vm519 = vmor %vm517, %vm518
  %v520 = vsel %vm519, %v512, %v516
  %v521 = vand.u32 2147483647, %v412
  %vm522 = vcmp.eq.f32.partialorder %v521, 8.507059e+37
  %v523 = vand.u32 %v412, 2147483648
  %v524 = vor.u32 1.1754944e-38, %v523
  %v525 = vsel %vm522, %v524, %v520
  %v526 = vmul.f32 1.0, %v525
  %v527 = vrcp.pop %v413
  %v528 = vmul.f32 %v413, %v527
  %v529 = vsub.f32 1.0, %v528
  %v530 = vmul.f32 %v527, %v529
  %v531 = vadd.f32 %v527, %v530
  %vm532 = vweird.f32 %v413
  %vm533 = vweird.f32 %v527
  %vm534 = vmor %vm532, %vm533
  %v535 = vsel %vm534, %v527, %v531
  %v536 = vand.u32 2147483647, %v413
  %vm537 = vcmp.eq.f32.partialorder %v536, 8.507059e+37
  %v538 = vand.u32 %v413, 2147483648
  %v539 = vor.u32 1.1754944e-38, %v538
  %v540 = vsel %vm537, %v539, %v535
  %v541 = vmul.f32 1.0, %v540
  %v542 = vrcp.pop %v414
  %v543 = vmul.f32 %v414, %v542
  %v544 = vsub.f32 1.0, %v543
  %v545 = vmul.f32 %v542, %v544
  %v546 = vadd.f32 %v542, %v545
  %vm547 = vweird.f32 %v414
  %vm548 = vweird.f32 %v542
  %vm549 = vmor %vm547, %vm548
  %v550 = vsel %vm549, %v542, %v546
  %v551 = vand.u32 2147483647, %v414
  %vm552 = vcmp.eq.f32.partialorder %v551, 8.507059e+37
  %v553 = vand.u32 %v414, 2147483648
  %v554 = vor.u32 1.1754944e-38, %v553
  %v555 = vsel %vm552, %v554, %v550
  %v556 = vmul.f32 1.0, %v555
  %v557 = vrcp.pop %v415
  %v558 = vmul.f32 %v415, %v557
  %v559 = vsub.f32 1.0, %v558
  %v560 = vmul.f32 %v557, %v559
  %v561 = vadd.f32 %v557, %v560
  %vm562 = vweird.f32 %v415
  %vm563 = vweird.f32 %v557
  %vm564 = vmor %vm562, %vm563
  %v565 = vsel %vm564, %v557, %v561
  %v566 = vand.u32 2147483647, %v415
  %vm567 = vcmp.eq.f32.partialorder %v566, 8.507059e+37
  %v568 = vand.u32 %v415, 2147483648
  %v569 = vor.u32 1.1754944e-38, %v568
  %v570 = vsel %vm567, %v569, %v565
  %v571 = vmul.f32 1.0, %v570
  %v572 = vrcp.pop %v416
  %v573 = vmul.f32 %v416, %v572
  %v574 = vsub.f32 1.0, %v573
  %v575 = vmul.f32 %v572, %v574
  %v576 = vadd.f32 %v572, %v575
  %vm577 = vweird.f32 %v416
  %vm578 = vweird.f32 %v572
  %vm579 = vmor %vm577, %vm578
  %v580 = vsel %vm579, %v572, %v576
  %v581 = vand.u32 2147483647, %v416
  %vm582 = vcmp.eq.f32.partialorder %v581, 8.507059e+37
  %v583 = vand.u32 %v416, 2147483648
  %v584 = vor.u32 1.1754944e-38, %v583
  %v585 = vsel %vm582, %v584, %v580
  %v586 = vmul.f32 1.0, %v585
  %v587 = vrcp.pop %v417
  %v588 = vmul.f32 %v417, %v587
  %v589 = vsub.f32 1.0, %v588
  %v590 = vmul.f32 %v587, %v589
  %v591 = vadd.f32 %v587, %v590
  %vm592 = vweird.f32 %v417
  %vm593 = vweird.f32 %v587
  %vm594 = vmor %vm592, %vm593
  %v595 = vsel %vm594, %v587, %v591
  %v596 = vand.u32 2147483647, %v417
  %vm597 = vcmp.eq.f32.partialorder %v596, 8.507059e+37
  %v598 = vand.u32 %v417, 2147483648
  %v599 = vor.u32 1.1754944e-38, %v598
  %v600 = vsel %vm597, %v599, %v595
  %v601 = vmul.f32 1.0, %v600
  %v602 = vrcp.pop %v418
  %v603 = vmul.f32 %v418, %v602
  %v604 = vsub.f32 1.0, %v603
  %v605 = vmul.f32 %v602, %v604
  %v606 = vadd.f32 %v602, %v605
  %vm607 = vweird.f32 %v418
  %vm608 = vweird.f32 %v602
  %vm609 = vmor %vm607, %vm608
  %v610 = vsel %vm609, %v602, %v606
  %v611 = vand.u32 2147483647, %v418
  %vm612 = vcmp.eq.f32.partialorder %v611, 8.507059e+37
  %v613 = vand.u32 %v418, 2147483648
  %v614 = vor.u32 1.1754944e-38, %v613
  %v615 = vsel %vm612, %v614, %v610
  %v616 = vmul.f32 1.0, %v615
  %v617 = vrcp.pop %v419
  %v618 = vmul.f32 %v419, %v617
  %v619 = vsub.f32 1.0, %v618
  %v620 = vmul.f32 %v617, %v619
  %v621 = vadd.f32 %v617, %v620
  %vm622 = vweird.f32 %v419
  %vm623 = vweird.f32 %v617
  %vm624 = vmor %vm622, %vm623
  %v625 = vsel %vm624, %v617, %v621
  %v626 = vand.u32 2147483647, %v419
  %vm627 = vcmp.eq.f32.partialorder %v626, 8.507059e+37
  %v628 = vand.u32 %v419, 2147483648
  %v629 = vor.u32 1.1754944e-38, %v628
  %v630 = vsel %vm627, %v629, %v625
  %v631 = vmul.f32 1.0, %v630
  %v632 = vrcp.pop %v420
  %v633 = vmul.f32 %v420, %v632
  %v634 = vsub.f32 1.0, %v633
  %v635 = vmul.f32 %v632, %v634
  %v636 = vadd.f32 %v632, %v635
  %vm637 = vweird.f32 %v420
  %vm638 = vweird.f32 %v632
  %vm639 = vmor %vm637, %vm638
  %v640 = vsel %vm639, %v632, %v636
  %v641 = vand.u32 2147483647, %v420
  %vm642 = vcmp.eq.f32.partialorder %v641, 8.507059e+37
  %v643 = vand.u32 %v420, 2147483648
  %v644 = vor.u32 1.1754944e-38, %v643
  %v645 = vsel %vm642, %v644, %v640
  %v646 = vmul.f32 1.0, %v645
  %v647 = vrcp.pop %v421
  %v648 = vmul.f32 %v421, %v647
  %v649 = vsub.f32 1.0, %v648
  %v650 = vmul.f32 %v647, %v649
  %v651 = vadd.f32 %v647, %v650
  %vm652 = vweird.f32 %v421
  %vm653 = vweird.f32 %v647
  %vm654 = vmor %vm652, %vm653
  %v655 = vsel %vm654, %v647, %v651
  %v656 = vand.u32 2147483647, %v421
  %vm657 = vcmp.eq.f32.partialorder %v656, 8.507059e+37
  %v658 = vand.u32 %v421, 2147483648
  %v659 = vor.u32 1.1754944e-38, %v658
  %v660 = vsel %vm657, %v659, %v655
  %v661 = vmul.f32 1.0, %v660
  %v662 = vmul.f32 %v292, %v436
  %v663 = vmul.f32 %v311, %v451
  %v664 = vmul.f32 %v330, %v466
  %v665 = vmul.f32 %v349, %v481
  %v666 = vmul.f32 %v294, %v496
  %v667 = vmul.f32 %v313, %v511
  %v668 = vmul.f32 %v332, %v526
  %v669 = vmul.f32 %v351, %v541
  %v670 = vmul.f32 %v297, %v556
  %v671 = vmul.f32 %v316, %v571
  %v672 = vmul.f32 %v335, %v586
  %v673 = vmul.f32 %v354, %v601
  %v674 = vmul.f32 %v299, %v616
  %v675 = vmul.f32 %v318, %v631
  %v676 = vmul.f32 %v337, %v646
  %v677 = vmul.f32 %v356, %v661
  %678 = vrot.lane.b32.xlu0 %v662, 17
  %v679 = vpop.permute.xlu0 %678
  %680 = vrot.lane.b32.xlu0 %v666, 17
  %v681 = vpop.permute.xlu0 %680
  %682 = vrot.lane.b32.xlu0 %v670, 17
  %v683 = vpop.permute.xlu0 %682
  %684 = vrot.lane.b32.xlu0 %v674, 17
  %v685 = vpop.permute.xlu0 %684
  %686 = vrot.lane.b32.xlu0 %v663, 17
  %v687 = vpop.permute.xlu0 %686
  %688 = vrot.lane.b32.xlu0 %v667, 17
  %v689 = vpop.permute.xlu0 %688
  %690 = vrot.lane.b32.xlu0 %v671, 17
  %v691 = vpop.permute.xlu0 %690
  %692 = vrot.lane.b32.xlu0 %v675, 17
  %v693 = vpop.permute.xlu0 %692
  %694 = vrot.lane.b32.xlu0 %v664, 17
  %v695 = vpop.permute.xlu0 %694
  %696 = vrot.lane.b32.xlu0 %v668, 17
  %v697 = vpop.permute.xlu0 %696
  %698 = vrot.lane.b32.xlu0 %v672, 17
  %v699 = vpop.permute.xlu0 %698
  %700 = vrot.lane.b32.xlu0 %v676, 17
  %v701 = vpop.permute.xlu0 %700
  %702 = vrot.lane.b32.xlu0 %v665, 17
  %v703 = vpop.permute.xlu0 %702
  %704 = vrot.lane.b32.xlu0 %v669, 17
  %v705 = vpop.permute.xlu0 %704
  %706 = vrot.lane.b32.xlu0 %v673, 17
  %v707 = vpop.permute.xlu0 %706
  %708 = vrot.lane.b32.xlu0 %v677, 17
  %v709 = vpop.permute.xlu0 %708
  %v710 = vsel %vm52, %v695, %v703
  %v711 = vsel %vm52, %v697, %v705
  %v712 = vsel %vm52, %v699, %v707
  %v713 = vsel %vm52, %v701, %v709
  %v714 = vsel %vm52, %v687, %v695
  %v715 = vsel %vm52, %v689, %v697
  %v716 = vsel %vm52, %v691, %v699
  %v717 = vsel %vm52, %v693, %v701
  %v718 = vsel %vm52, %v679, %v687
  %v719 = vsel %vm52, %v681, %v689
  %v720 = vsel %vm52, %v683, %v691
  %v721 = vsel %vm52, %v685, %v693
  %v722 = vsel %vm52, %v703, %v679
  %v723 = vsel %vm52, %v705, %v681
  %v724 = vsel %vm52, %v707, %v683
  %v725 = vsel %vm52, %v709, %v685
  %v726 = vmul.f32 %v722, %v57
  %v727 = vmul.f32 %v718, %v58
  %v728 = vmul.f32 %v714, %v59
  %v729 = vmul.f32 %v710, %v60
  %v730 = vmul.f32 %v723, %v57
  %v731 = vmul.f32 %v719, %v58
  %v732 = vmul.f32 %v715, %v59
  %v733 = vmul.f32 %v711, %v60
  %v734 = vmul.f32 %v724, %v57
  %v735 = vmul.f32 %v720, %v58
  %v736 = vmul.f32 %v716, %v59
  %v737 = vmul.f32 %v712, %v60
  %v738 = vmul.f32 %v725, %v57
  %v739 = vmul.f32 %v721, %v58
  %v740 = vmul.f32 %v717, %v59
  %v741 = vmul.f32 %v713, %v60
  %742 = vrot.lane.b32.xlu0 %v662, 16
  %v743 = vpop.permute.xlu0 %742
  %744 = vrot.lane.b32.xlu0 %v666, 16
  %v745 = vpop.permute.xlu0 %744
  %746 = vrot.lane.b32.xlu0 %v670, 16
  %v747 = vpop.permute.xlu0 %746
  %748 = vrot.lane.b32.xlu0 %v674, 16
  %v749 = vpop.permute.xlu0 %748
  %750 = vrot.lane.b32.xlu0 %v663, 16
  %v751 = vpop.permute.xlu0 %750
  %752 = vrot.lane.b32.xlu0 %v667, 16
  %v753 = vpop.permute.xlu0 %752
  %754 = vrot.lane.b32.xlu0 %v671, 16
  %v755 = vpop.permute.xlu0 %754
  %756 = vrot.lane.b32.xlu0 %v675, 16
  %v757 = vpop.permute.xlu0 %756
  %758 = vrot.lane.b32.xlu0 %v664, 16
  %v759 = vpop.permute.xlu0 %758
  %760 = vrot.lane.b32.xlu0 %v668, 16
  %v761 = vpop.permute.xlu0 %760
  %762 = vrot.lane.b32.xlu0 %v672, 16
  %v763 = vpop.permute.xlu0 %762
  %764 = vrot.lane.b32.xlu0 %v676, 16
  %v765 = vpop.permute.xlu0 %764
  %766 = vrot.lane.b32.xlu0 %v665, 16
  %v767 = vpop.permute.xlu0 %766
  %768 = vrot.lane.b32.xlu0 %v669, 16
  %v769 = vpop.permute.xlu0 %768
  %770 = vrot.lane.b32.xlu0 %v673, 16
  %v771 = vpop.permute.xlu0 %770
  %772 = vrot.lane.b32.xlu0 %v677, 16
  %v773 = vpop.permute.xlu0 %772
  %v774 = vsel %vm73, %v759, %v767
  %v775 = vsel %vm73, %v761, %v769
  %v776 = vsel %vm73, %v763, %v771
  %v777 = vsel %vm73, %v765, %v773
  %v778 = vsel %vm73, %v751, %v759
  %v779 = vsel %vm73, %v753, %v761
  %v780 = vsel %vm73, %v755, %v763
  %v781 = vsel %vm73, %v757, %v765
  %v782 = vsel %vm73, %v743, %v751
  %v783 = vsel %vm73, %v745, %v753
  %v784 = vsel %vm73, %v747, %v755
  %v785 = vsel %vm73, %v749, %v757
  %v786 = vsel %vm73, %v767, %v743
  %v787 = vsel %vm73, %v769, %v745
  %v788 = vsel %vm73, %v771, %v747
  %v789 = vsel %vm73, %v773, %v749
  %v790 = vmul.f32 %v786, %v78
  %v791 = vmul.f32 %v782, %v79
  %v792 = vmul.f32 %v778, %v80
  %v793 = vmul.f32 %v774, %v81
  %v794 = vmul.f32 %v787, %v78
  %v795 = vmul.f32 %v783, %v79
  %v796 = vmul.f32 %v779, %v80
  %v797 = vmul.f32 %v775, %v81
  %v798 = vmul.f32 %v788, %v78
  %v799 = vmul.f32 %v784, %v79
  %v800 = vmul.f32 %v780, %v80
  %v801 = vmul.f32 %v776, %v81
  %v802 = vmul.f32 %v789, %v78
  %v803 = vmul.f32 %v785, %v79
  %v804 = vmul.f32 %v781, %v80
  %v805 = vmul.f32 %v777, %v81
  %806 = vrot.lane.b32.xlu0 %v662, 15
  %v807 = vpop.permute.xlu0 %806
  %808 = vrot.lane.b32.xlu0 %v666, 15
  %v809 = vpop.permute.xlu0 %808
  %810 = vrot.lane.b32.xlu0 %v670, 15
  %v811 = vpop.permute.xlu0 %810
  %812 = vrot.lane.b32.xlu0 %v674, 15
  %v813 = vpop.permute.xlu0 %812
  %814 = vrot.lane.b32.xlu0 %v663, 15
  %v815 = vpop.permute.xlu0 %814
  %816 = vrot.lane.b32.xlu0 %v667, 15
  %v817 = vpop.permute.xlu0 %816
  %818 = vrot.lane.b32.xlu0 %v671, 15
  %v819 = vpop.permute.xlu0 %818
  %820 = vrot.lane.b32.xlu0 %v675, 15
  %v821 = vpop.permute.xlu0 %820
  %822 = vrot.lane.b32.xlu0 %v664, 15
  %v823 = vpop.permute.xlu0 %822
  %824 = vrot.lane.b32.xlu0 %v668, 15
  %v825 = vpop.permute.xlu0 %824
  %826 = vrot.lane.b32.xlu0 %v672, 15
  %v827 = vpop.permute.xlu0 %826
  %828 = vrot.lane.b32.xlu0 %v676, 15
  %v829 = vpop.permute.xlu0 %828
  %830 = vrot.lane.b32.xlu0 %v665, 15
  %v831 = vpop.permute.xlu0 %830
  %832 = vrot.lane.b32.xlu0 %v669, 15
  %v833 = vpop.permute.xlu0 %832
  %834 = vrot.lane.b32.xlu0 %v673, 15
  %v835 = vpop.permute.xlu0 %834
  %836 = vrot.lane.b32.xlu0 %v677, 15
  %v837 = vpop.permute.xlu0 %836
  %v838 = vsel %vm94, %v823, %v831
  %v839 = vsel %vm94, %v825, %v833
  %v840 = vsel %vm94, %v827, %v835
  %v841 = vsel %vm94, %v829, %v837
  %v842 = vsel %vm94, %v815, %v823
  %v843 = vsel %vm94, %v817, %v825
  %v844 = vsel %vm94, %v819, %v827
  %v845 = vsel %vm94, %v821, %v829
  %v846 = vsel %vm94, %v807, %v815
  %v847 = vsel %vm94, %v809, %v817
  %v848 = vsel %vm94, %v811, %v819
  %v849 = vsel %vm94, %v813, %v821
  %v850 = vsel %vm94, %v831, %v807
  %v851 = vsel %vm94, %v833, %v809
  %v852 = vsel %vm94, %v835, %v811
  %v853 = vsel %vm94, %v837, %v813
  %v854 = vmul.f32 %v850, %v99
  %v855 = vmul.f32 %v846, %v100
  %v856 = vmul.f32 %v842, %v101
  %v857 = vmul.f32 %v838, %v102
  %v858 = vmul.f32 %v851, %v99
  %v859 = vmul.f32 %v847, %v100
  %v860 = vmul.f32 %v843, %v101
  %v861 = vmul.f32 %v839, %v102
  %v862 = vmul.f32 %v852, %v99
  %v863 = vmul.f32 %v848, %v100
  %v864 = vmul.f32 %v844, %v101
  %v865 = vmul.f32 %v840, %v102
  %v866 = vmul.f32 %v853, %v99
  %v867 = vmul.f32 %v849, %v100
  %v868 = vmul.f32 %v845, %v101
  %v869 = vmul.f32 %v841, %v102
  %870 = vrot.lane.b32.xlu0 %v662, 1
  %v871 = vpop.permute.xlu0 %870
  %872 = vrot.lane.b32.xlu0 %v666, 1
  %v873 = vpop.permute.xlu0 %872
  %874 = vrot.lane.b32.xlu0 %v670, 1
  %v875 = vpop.permute.xlu0 %874
  %876 = vrot.lane.b32.xlu0 %v674, 1
  %v877 = vpop.permute.xlu0 %876
  %878 = vrot.lane.b32.xlu0 %v663, 1
  %v879 = vpop.permute.xlu0 %878
  %880 = vrot.lane.b32.xlu0 %v667, 1
  %v881 = vpop.permute.xlu0 %880
  %882 = vrot.lane.b32.xlu0 %v671, 1
  %v883 = vpop.permute.xlu0 %882
  %884 = vrot.lane.b32.xlu0 %v675, 1
  %v885 = vpop.permute.xlu0 %884
  %886 = vrot.lane.b32.xlu0 %v664, 1
  %v887 = vpop.permute.xlu0 %886
  %888 = vrot.lane.b32.xlu0 %v668, 1
  %v889 = vpop.permute.xlu0 %888
  %890 = vrot.lane.b32.xlu0 %v672, 1
  %v891 = vpop.permute.xlu0 %890
  %892 = vrot.lane.b32.xlu0 %v676, 1
  %v893 = vpop.permute.xlu0 %892
  %894 = vrot.lane.b32.xlu0 %v665, 1
  %v895 = vpop.permute.xlu0 %894
  %896 = vrot.lane.b32.xlu0 %v669, 1
  %v897 = vpop.permute.xlu0 %896
  %898 = vrot.lane.b32.xlu0 %v673, 1
  %v899 = vpop.permute.xlu0 %898
  %900 = vrot.lane.b32.xlu0 %v677, 1
  %v901 = vpop.permute.xlu0 %900
  %v902 = vsel %vm115, %v887, %v895
  %v903 = vsel %vm115, %v889, %v897
  %v904 = vsel %vm115, %v891, %v899
  %v905 = vsel %vm115, %v893, %v901
  %v906 = vsel %vm115, %v879, %v887
  %v907 = vsel %vm115, %v881, %v889
  %v908 = vsel %vm115, %v883, %v891
  %v909 = vsel %vm115, %v885, %v893
  %v910 = vsel %vm115, %v871, %v879
  %v911 = vsel %vm115, %v873, %v881
  %v912 = vsel %vm115, %v875, %v883
  %v913 = vsel %vm115, %v877, %v885
  %v914 = vsel %vm115, %v895, %v871
  %v915 = vsel %vm115, %v897, %v873
  %v916 = vsel %vm115, %v899, %v875
  %v917 = vsel %vm115, %v901, %v877
  %v918 = vmul.f32 %v914, %v120
  %v919 = vmul.f32 %v910, %v121
  %v920 = vmul.f32 %v906, %v122
  %v921 = vmul.f32 %v902, %v123
  %v922 = vmul.f32 %v915, %v120
  %v923 = vmul.f32 %v911, %v121
  %v924 = vmul.f32 %v907, %v122
  %v925 = vmul.f32 %v903, %v123
  %v926 = vmul.f32 %v916, %v120
  %v927 = vmul.f32 %v912, %v121
  %v928 = vmul.f32 %v908, %v122
  %v929 = vmul.f32 %v904, %v123
  %v930 = vmul.f32 %v917, %v120
  %v931 = vmul.f32 %v913, %v121
  %v932 = vmul.f32 %v909, %v122
  %v933 = vmul.f32 %v905, %v123
  %934 = vrot.lane.b32.xlu0 %v662, 127
  %v935 = vpop.permute.xlu0 %934
  %936 = vrot.lane.b32.xlu0 %v666, 127
  %v937 = vpop.permute.xlu0 %936
  %938 = vrot.lane.b32.xlu0 %v670, 127
  %v939 = vpop.permute.xlu0 %938
  %940 = vrot.lane.b32.xlu0 %v674, 127
  %v941 = vpop.permute.xlu0 %940
  %942 = vrot.lane.b32.xlu0 %v663, 127
  %v943 = vpop.permute.xlu0 %942
  %944 = vrot.lane.b32.xlu0 %v667, 127
  %v945 = vpop.permute.xlu0 %944
  %946 = vrot.lane.b32.xlu0 %v671, 127
  %v947 = vpop.permute.xlu0 %946
  %948 = vrot.lane.b32.xlu0 %v675, 127
  %v949 = vpop.permute.xlu0 %948
  %950 = vrot.lane.b32.xlu0 %v664, 127
  %v951 = vpop.permute.xlu0 %950
  %952 = vrot.lane.b32.xlu0 %v668, 127
  %v953 = vpop.permute.xlu0 %952
  %954 = vrot.lane.b32.xlu0 %v672, 127
  %v955 = vpop.permute.xlu0 %954
  %956 = vrot.lane.b32.xlu0 %v676, 127
  %v957 = vpop.permute.xlu0 %956
  %958 = vrot.lane.b32.xlu0 %v665, 127
  %v959 = vpop.permute.xlu0 %958
  %960 = vrot.lane.b32.xlu0 %v669, 127
  %v961 = vpop.permute.xlu0 %960
  %962 = vrot.lane.b32.xlu0 %v673, 127
  %v963 = vpop.permute.xlu0 %962
  %964 = vrot.lane.b32.xlu0 %v677, 127
  %v965 = vpop.permute.xlu0 %964
  %v966 = vsel %vm136, %v951, %v959
  %v967 = vsel %vm136, %v953, %v961
  %v968 = vsel %vm136, %v955, %v963
  %v969 = vsel %vm136, %v957, %v965
  %v970 = vsel %vm136, %v943, %v951
  %v971 = vsel %vm136, %v945, %v953
  %v972 = vsel %vm136, %v947, %v955
  %v973 = vsel %vm136, %v949, %v957
  %v974 = vsel %vm136, %v935, %v943
  %v975 = vsel %vm136, %v937, %v945
  %v976 = vsel %vm136, %v939, %v947
  %v977 = vsel %vm136, %v941, %v949
  %v978 = vsel %vm136, %v959, %v935
  %v979 = vsel %vm136, %v961, %v937
  %v980 = vsel %vm136, %v963, %v939
  %v981 = vsel %vm136, %v965, %v941
  %v982 = vmul.f32 %v974, %v141
  %v983 = vmul.f32 %v970, %v142
  %v984 = vmul.f32 %v966, %v143
  %v985 = vmul.f32 %v978, %v144
  %v986 = vmul.f32 %v975, %v141
  %v987 = vmul.f32 %v971, %v142
  %v988 = vmul.f32 %v967, %v143
  %v989 = vmul.f32 %v979, %v144
  %v990 = vmul.f32 %v976, %v141
  %v991 = vmul.f32 %v972, %v142
  %v992 = vmul.f32 %v968, %v143
  %v993 = vmul.f32 %v980, %v144
  %v994 = vmul.f32 %v977, %v141
  %v995 = vmul.f32 %v973, %v142
  %v996 = vmul.f32 %v969, %v143
  %v997 = vmul.f32 %v981, %v144
  %998 = vrot.lane.b32.xlu0 %v662, 113
  %v999 = vpop.permute.xlu0 %998
  %1000 = vrot.lane.b32.xlu0 %v666, 113
  %v1001 = vpop.permute.xlu0 %1000
  %1002 = vrot.lane.b32.xlu0 %v670, 113
  %v1003 = vpop.permute.xlu0 %1002
  %1004 = vrot.lane.b32.xlu0 %v674, 113
  %v1005 = vpop.permute.xlu0 %1004
  %1006 = vrot.lane.b32.xlu0 %v663, 113
  %v1007 = vpop.permute.xlu0 %1006
  %1008 = vrot.lane.b32.xlu0 %v667, 113
  %v1009 = vpop.permute.xlu0 %1008
  %1010 = vrot.lane.b32.xlu0 %v671, 113
  %v1011 = vpop.permute.xlu0 %1010
  %1012 = vrot.lane.b32.xlu0 %v675, 113
  %v1013 = vpop.permute.xlu0 %1012
  %1014 = vrot.lane.b32.xlu0 %v664, 113
  %v1015 = vpop.permute.xlu0 %1014
  %1016 = vrot.lane.b32.xlu0 %v668, 113
  %v1017 = vpop.permute.xlu0 %1016
  %1018 = vrot.lane.b32.xlu0 %v672, 113
  %v1019 = vpop.permute.xlu0 %1018
  %1020 = vrot.lane.b32.xlu0 %v676, 113
  %v1021 = vpop.permute.xlu0 %1020
  %1022 = vrot.lane.b32.xlu0 %v665, 113
  %v1023 = vpop.permute.xlu0 %1022
  %1024 = vrot.lane.b32.xlu0 %v669, 113
  %v1025 = vpop.permute.xlu0 %1024
  %1026 = vrot.lane.b32.xlu0 %v673, 113
  %v1027 = vpop.permute.xlu0 %1026
  %1028 = vrot.lane.b32.xlu0 %v677, 113
  %v1029 = vpop.permute.xlu0 %1028
  %v1030 = vsel %vm157, %v1015, %v1023
  %v1031 = vsel %vm157, %v1017, %v1025
  %v1032 = vsel %vm157, %v1019, %v1027
  %v1033 = vsel %vm157, %v1021, %v1029
  %v1034 = vsel %vm157, %v1007, %v1015
  %v1035 = vsel %vm157, %v1009, %v1017
  %v1036 = vsel %vm157, %v1011, %v1019
  %v1037 = vsel %vm157, %v1013, %v1021
  %v1038 = vsel %vm157, %v999, %v1007
  %v1039 = vsel %vm157, %v1001, %v1009
  %v1040 = vsel %vm157, %v1003, %v1011
  %v1041 = vsel %vm157, %v1005, %v1013
  %v1042 = vsel %vm157, %v1023, %v999
  %v1043 = vsel %vm157, %v1025, %v1001
  %v1044 = vsel %vm157, %v1027, %v1003
  %v1045 = vsel %vm157, %v1029, %v1005
  %v1046 = vmul.f32 %v1038, %v162
  %v1047 = vmul.f32 %v1034, %v163
  %v1048 = vmul.f32 %v1030, %v164
  %v1049 = vmul.f32 %v1042, %v165
  %v1050 = vmul.f32 %v1039, %v162
  %v1051 = vmul.f32 %v1035, %v163
  %v1052 = vmul.f32 %v1031, %v164
  %v1053 = vmul.f32 %v1043, %v165
  %v1054 = vmul.f32 %v1040, %v162
  %v1055 = vmul.f32 %v1036, %v163
  %v1056 = vmul.f32 %v1032, %v164
  %v1057 = vmul.f32 %v1044, %v165
  %v1058 = vmul.f32 %v1041, %v162
  %v1059 = vmul.f32 %v1037, %v163
  %v1060 = vmul.f32 %v1033, %v164
  %v1061 = vmul.f32 %v1045, %v165
  %1062 = vrot.lane.b32.xlu0 %v662, 112
  %v1063 = vpop.permute.xlu0 %1062
  %1064 = vrot.lane.b32.xlu0 %v666, 112
  %v1065 = vpop.permute.xlu0 %1064
  %1066 = vrot.lane.b32.xlu0 %v670, 112
  %v1067 = vpop.permute.xlu0 %1066
  %1068 = vrot.lane.b32.xlu0 %v674, 112
  %v1069 = vpop.permute.xlu0 %1068
  %1070 = vrot.lane.b32.xlu0 %v663, 112
  %v1071 = vpop.permute.xlu0 %1070
  %1072 = vrot.lane.b32.xlu0 %v667, 112
  %v1073 = vpop.permute.xlu0 %1072
  %1074 = vrot.lane.b32.xlu0 %v671, 112
  %v1075 = vpop.permute.xlu0 %1074
  %1076 = vrot.lane.b32.xlu0 %v675, 112
  %v1077 = vpop.permute.xlu0 %1076
  %1078 = vrot.lane.b32.xlu0 %v664, 112
  %v1079 = vpop.permute.xlu0 %1078
  %1080 = vrot.lane.b32.xlu0 %v668, 112
  %v1081 = vpop.permute.xlu0 %1080
  %1082 = vrot.lane.b32.xlu0 %v672, 112
  %v1083 = vpop.permute.xlu0 %1082
  %1084 = vrot.lane.b32.xlu0 %v676, 112
  %v1085 = vpop.permute.xlu0 %1084
  %1086 = vrot.lane.b32.xlu0 %v665, 112
  %v1087 = vpop.permute.xlu0 %1086
  %1088 = vrot.lane.b32.xlu0 %v669, 112
  %v1089 = vpop.permute.xlu0 %1088
  %1090 = vrot.lane.b32.xlu0 %v673, 112
  %v1091 = vpop.permute.xlu0 %1090
  %1092 = vrot.lane.b32.xlu0 %v677, 112
  %v1093 = vpop.permute.xlu0 %1092
  %v1094 = vsel %vm178, %v1079, %v1087
  %v1095 = vsel %vm178, %v1081, %v1089
  %v1096 = vsel %vm178, %v1083, %v1091
  %v1097 = vsel %vm178, %v1085, %v1093
  %v1098 = vsel %vm178, %v1071, %v1079
  %v1099 = vsel %vm178, %v1073, %v1081
  %v1100 = vsel %vm178, %v1075, %v1083
  %v1101 = vsel %vm178, %v1077, %v1085
  %v1102 = vsel %vm178, %v1063, %v1071
  %v1103 = vsel %vm178, %v1065, %v1073
  %v1104 = vsel %vm178, %v1067, %v1075
  %v1105 = vsel %vm178, %v1069, %v1077
  %v1106 = vsel %vm178, %v1087, %v1063
  %v1107 = vsel %vm178, %v1089, %v1065
  %v1108 = vsel %vm178, %v1091, %v1067
  %v1109 = vsel %vm178, %v1093, %v1069
  %v1110 = vmul.f32 %v1102, %v183
  %v1111 = vmul.f32 %v1098, %v184
  %v1112 = vmul.f32 %v1094, %v185
  %v1113 = vmul.f32 %v1106, %v186
  %v1114 = vmul.f32 %v1103, %v183
  %v1115 = vmul.f32 %v1099, %v184
  %v1116 = vmul.f32 %v1095, %v185
  %v1117 = vmul.f32 %v1107, %v186
  %v1118 = vmul.f32 %v1104, %v183
  %v1119 = vmul.f32 %v1100, %v184
  %v1120 = vmul.f32 %v1096, %v185
  %v1121 = vmul.f32 %v1108, %v186
  %v1122 = vmul.f32 %v1105, %v183
  %v1123 = vmul.f32 %v1101, %v184
  %v1124 = vmul.f32 %v1097, %v185
  %v1125 = vmul.f32 %v1109, %v186
  %1126 = vrot.lane.b32.xlu0 %v662, 111
  %v1127 = vpop.permute.xlu0 %1126
  %1128 = vrot.lane.b32.xlu0 %v666, 111
  %v1129 = vpop.permute.xlu0 %1128
  %1130 = vrot.lane.b32.xlu0 %v670, 111
  %v1131 = vpop.permute.xlu0 %1130
  %1132 = vrot.lane.b32.xlu0 %v674, 111
  %v1133 = vpop.permute.xlu0 %1132
  %1134 = vrot.lane.b32.xlu0 %v663, 111
  %v1135 = vpop.permute.xlu0 %1134
  %1136 = vrot.lane.b32.xlu0 %v667, 111
  %v1137 = vpop.permute.xlu0 %1136
  %1138 = vrot.lane.b32.xlu0 %v671, 111
  %v1139 = vpop.permute.xlu0 %1138
  %1140 = vrot.lane.b32.xlu0 %v675, 111
  %v1141 = vpop.permute.xlu0 %1140
  %1142 = vrot.lane.b32.xlu0 %v664, 111
  %v1143 = vpop.permute.xlu0 %1142
  %1144 = vrot.lane.b32.xlu0 %v668, 111
  %v1145 = vpop.permute.xlu0 %1144
  %1146 = vrot.lane.b32.xlu0 %v672, 111
  %v1147 = vpop.permute.xlu0 %1146
  %1148 = vrot.lane.b32.xlu0 %v676, 111
  %v1149 = vpop.permute.xlu0 %1148
  %1150 = vrot.lane.b32.xlu0 %v665, 111
  %v1151 = vpop.permute.xlu0 %1150
  %1152 = vrot.lane.b32.xlu0 %v669, 111
  %v1153 = vpop.permute.xlu0 %1152
  %1154 = vrot.lane.b32.xlu0 %v673, 111
  %v1155 = vpop.permute.xlu0 %1154
  %1156 = vrot.lane.b32.xlu0 %v677, 111
  %v1157 = vpop.permute.xlu0 %1156
  %v1158 = vsel %vm199, %v1143, %v1151
  %v1159 = vsel %vm199, %v1145, %v1153
  %v1160 = vsel %vm199, %v1147, %v1155
  %v1161 = vsel %vm199, %v1149, %v1157
  %v1162 = vsel %vm199, %v1135, %v1143
  %v1163 = vsel %vm199, %v1137, %v1145
  %v1164 = vsel %vm199, %v1139, %v1147
  %v1165 = vsel %vm199, %v1141, %v1149
  %v1166 = vsel %vm199, %v1127, %v1135
  %v1167 = vsel %vm199, %v1129, %v1137
  %v1168 = vsel %vm199, %v1131, %v1139
  %v1169 = vsel %vm199, %v1133, %v1141
  %v1170 = vsel %vm199, %v1151, %v1127
  %v1171 = vsel %vm199, %v1153, %v1129
  %v1172 = vsel %vm199, %v1155, %v1131
  %v1173 = vsel %vm199, %v1157, %v1133
  %v1174 = vmul.f32 %v1166, %v204
  %v1175 = vmul.f32 %v1162, %v205
  %v1176 = vmul.f32 %v1158, %v206
  %v1177 = vmul.f32 %v1170, %v207
  %v1178 = vmul.f32 %v1167, %v204
  %v1179 = vmul.f32 %v1163, %v205
  %v1180 = vmul.f32 %v1159, %v206
  %v1181 = vmul.f32 %v1171, %v207
  %v1182 = vmul.f32 %v1168, %v204
  %v1183 = vmul.f32 %v1164, %v205
  %v1184 = vmul.f32 %v1160, %v206
  %v1185 = vmul.f32 %v1172, %v207
  %v1186 = vmul.f32 %v1169, %v204
  %v1187 = vmul.f32 %v1165, %v205
  %v1188 = vmul.f32 %v1161, %v206
  %v1189 = vmul.f32 %v1173, %v207
  %v1190 = vpack.c.bf16 %v730, %v726
  %v1191 = vpack.c.bf16 %v731, %v727
  %v1192 = vpack.c.bf16 %v732, %v728
  %v1193 = vpack.c.bf16 %v733, %v729
  %v1194 = vpack.c.bf16 %v738, %v734
  %v1195 = vpack.c.bf16 %v739, %v735
  %v1196 = vpack.c.bf16 %v740, %v736
  %v1197 = vpack.c.bf16 %v741, %v737
  %v1198 = vpack.c.bf16 %v794, %v790
  %v1199 = vpack.c.bf16 %v795, %v791
  %v1200 = vpack.c.bf16 %v796, %v792
  %v1201 = vpack.c.bf16 %v797, %v793
  %v1202 = vpack.c.bf16 %v802, %v798
  %v1203 = vpack.c.bf16 %v803, %v799
  %v1204 = vpack.c.bf16 %v804, %v800
  %v1205 = vpack.c.bf16 %v805, %v801
  %v1206 = vpack.c.bf16 %v858, %v854
  %v1207 = vpack.c.bf16 %v859, %v855
  %v1208 = vpack.c.bf16 %v860, %v856
  %v1209 = vpack.c.bf16 %v861, %v857
  %v1210 = vpack.c.bf16 %v866, %v862
  %v1211 = vpack.c.bf16 %v867, %v863
  %v1212 = vpack.c.bf16 %v868, %v864
  %v1213 = vpack.c.bf16 %v869, %v865
  %v1214 = vpack.c.bf16 %v922, %v918
  %v1215 = vpack.c.bf16 %v923, %v919
  %v1216 = vpack.c.bf16 %v924, %v920
  %v1217 = vpack.c.bf16 %v925, %v921
  %v1218 = vpack.c.bf16 %v930, %v926
  %v1219 = vpack.c.bf16 %v931, %v927
  %v1220 = vpack.c.bf16 %v932, %v928
  %v1221 = vpack.c.bf16 %v933, %v929
  %v1222 = vpack.c.bf16 %v666, %v662
  %v1223 = vpack.c.bf16 %v667, %v663
  %v1224 = vpack.c.bf16 %v668, %v664
  %v1225 = vpack.c.bf16 %v669, %v665
  %v1226 = vpack.c.bf16 %v674, %v670
  %v1227 = vpack.c.bf16 %v675, %v671
  %v1228 = vpack.c.bf16 %v676, %v672
  %v1229 = vpack.c.bf16 %v677, %v673
  %v1230 = vpack.c.bf16 %v986, %v982
  %v1231 = vpack.c.bf16 %v987, %v983
  %v1232 = vpack.c.bf16 %v988, %v984
  %v1233 = vpack.c.bf16 %v989, %v985
  %v1234 = vpack.c.bf16 %v994, %v990
  %v1235 = vpack.c.bf16 %v995, %v991
  %v1236 = vpack.c.bf16 %v996, %v992
  %v1237 = vpack.c.bf16 %v997, %v993
  %v1238 = vpack.c.bf16 %v1050, %v1046
  %v1239 = vpack.c.bf16 %v1051, %v1047
  %v1240 = vpack.c.bf16 %v1052, %v1048
  %v1241 = vpack.c.bf16 %v1053, %v1049
  %v1242 = vpack.c.bf16 %v1058, %v1054
  %v1243 = vpack.c.bf16 %v1059, %v1055
  %v1244 = vpack.c.bf16 %v1060, %v1056
  %v1245 = vpack.c.bf16 %v1061, %v1057
  %v1246 = vpack.c.bf16 %v1114, %v1110
  %v1247 = vpack.c.bf16 %v1115, %v1111
  %v1248 = vpack.c.bf16 %v1116, %v1112
  %v1249 = vpack.c.bf16 %v1117, %v1113
  %v1250 = vpack.c.bf16 %v1122, %v1118
  %v1251 = vpack.c.bf16 %v1123, %v1119
  %v1252 = vpack.c.bf16 %v1124, %v1120
  %v1253 = vpack.c.bf16 %v1125, %v1121
  %v1254 = vpack.c.bf16 %v1178, %v1174
  %v1255 = vpack.c.bf16 %v1179, %v1175
  %v1256 = vpack.c.bf16 %v1180, %v1176
  %v1257 = vpack.c.bf16 %v1181, %v1177
  %v1258 = vpack.c.bf16 %v1186, %v1182
  %v1259 = vpack.c.bf16 %v1187, %v1183
  %v1260 = vpack.c.bf16 %v1188, %v1184
  %v1261 = vpack.c.bf16 %v1189, %v1185
  %v1262 = vld [vmem:[%s4] sm:$0xff]
  %v1263 = vld [vmem:[%s4 + $0x8] sm:$0xf]
  %v1264 = vld [vmem:[%s4 + $0xc] sm:$0xff]
  %v1265 = vld [vmem:[%s4 + $0x14] sm:$0xf]
  %v1266 = vld [vmem:[%s4 + $0x18] sm:$0xff]
  %v1267 = vld [vmem:[%s4 + $0x20] sm:$0xf]
  %v1268 = vld [vmem:[%s4 + $0x24] sm:$0xff]
  %v1269 = vld [vmem:[%s4 + $0x2c] sm:$0xf]
  %v1270 = vld [vmem:[%s6] sm:$0xff]
  %v1271 = vld [vmem:[%s6 + $0x8] sm:$0xff]
  %v1272 = vld [vmem:[%s6 + $0x10] sm:$0xff]
  %v1273 = vld [vmem:[%s6 + $0x18] sm:$0xff]
  %1275 = vset.pattern.permute.xlu0 0
  %1276 = vperm.xlu0 %1275, %v1270
  %v1277 = vpop.permute.xlu0 %1276
  %1280 = vset.pattern.permute.xlu0 0
  %1281 = vperm.xlu0 %1280, %v1271
  %v1282 = vpop.permute.xlu0 %1281
  %1285 = vset.pattern.permute.xlu0 0
  %1286 = vperm.xlu0 %1285, %v1272
  %v1287 = vpop.permute.xlu0 %1286
  %1290 = vset.pattern.permute.xlu0 0
  %1291 = vperm.xlu0 %1290, %v1273
  %v1292 = vpop.permute.xlu0 %1291
  %v1302 = vunpack.c.l.b16 %v1262
  %v1303 = vunpack.c.h.b16 %v1262
  %v1304 = vunpack.c.l.b16 %v1263
  %v1305 = vunpack.c.l.b16 %v1264
  %v1306 = vunpack.c.h.b16 %v1264
  %v1307 = vunpack.c.l.b16 %v1265
  %v1308 = vunpack.c.l.b16 %v1266
  %v1309 = vunpack.c.h.b16 %v1266
  %v1310 = vunpack.c.l.b16 %v1267
  %v1311 = vunpack.c.l.b16 %v1268
  %v1312 = vunpack.c.h.b16 %v1268
  %v1313 = vunpack.c.l.b16 %v1269
  %v1314 = vpack.c.b16 %v1305, %v1302
  %v1315 = vpack.c.b16 %v1306, %v1303
  %v1316 = vpack.c.b16 %v1307, %v1304
  %v1317 = vpack.c.b16 %v1311, %v1308
  %v1318 = vpack.c.b16 %v1312, %v1309
  %v1319 = vpack.c.b16 %v1313, %v1310
  %vm1324 = vcmask 261120
  %v1326 = vsel %vm1324, %v1316, 0
  %v1329 = vsel %vm1324, %v1319, 0
  %1331 = vmatpush.bf16.msra.mxu0 %v1218
  %1332 = vmatpush.bf16.msra.mxu0 %v1214
  %1333 = vmatpush.bf16.msra.mxu0 %v1210
  %1334 = vmatpush.bf16.msra.mxu0 %v1206
  %1335 = vmatpush.bf16.msra.mxu0 %v1202
  %1336 = vmatpush.bf16.msra.mxu0 %v1198
  %1337 = vmatpush.bf16.msra.mxu0 %v1194
  %1338 = vmatpush.bf16.msra.mxu0 %v1190
  %1339 = vmatmul.bf16.gmra.mxu0 %v1314
  %v1340 = vpop.f32.mrf.mxu0
  %v1341 = vadd.f32 %v1277, %v1340
  %v1342 = vpop.f32.mrf.mxu0
  %v1343 = vadd.f32 %v1282, %v1342
  %1344 = vmatmul.bf16.gmra.mxu0 %v1317
  %v1345 = vpop.f32.mrf.mxu0
  %v1346 = vadd.f32 %v1287, %v1345
  %v1347 = vpop.f32.mrf.mxu0
  %v1348 = vadd.f32 %v1292, %v1347
  %1349 = vdwg.mxu0
  %1350 = vmatpush.bf16.msra.mxu0 %v1250
  %1351 = vmatpush.bf16.msra.mxu0 %v1246
  %1352 = vmatpush.bf16.msra.mxu0 %v1242
  %1353 = vmatpush.bf16.msra.mxu0 %v1238
  %1354 = vmatpush.bf16.msra.mxu0 %v1234
  %1355 = vmatpush.bf16.msra.mxu0 %v1230
  %1356 = vmatpush.bf16.msra.mxu0 %v1226
  %1357 = vmatpush.bf16.msra.mxu0 %v1222
  %1358 = vmatmul.bf16.gmra.mxu0 %v1315
  %v1359 = vpop.f32.mrf.mxu0
  %v1360 = vadd.f32 %v1341, %v1359
  %v1361 = vpop.f32.mrf.mxu0
  %v1362 = vadd.f32 %v1343, %v1361
  %1363 = vmatmul.bf16.gmra.mxu0 %v1318
  %v1364 = vpop.f32.mrf.mxu0
  %v1365 = vadd.f32 %v1346, %v1364
  %v1366 = vpop.f32.mrf.mxu0
  %v1367 = vadd.f32 %v1348, %v1366
  %1368 = vdwg.mxu0
  %1369 = vmatpush.bf16.msra.mxu0 0
  %1370 = vmatpush.bf16.msra.mxu0 0
  %1371 = vmatpush.bf16.msra.mxu0 0
  %1372 = vmatpush.bf16.msra.mxu0 0
  %1373 = vmatpush.bf16.msra.mxu0 0
  %1374 = vmatpush.bf16.msra.mxu0 0
  %1375 = vmatpush.bf16.msra.mxu0 %v1258
  %1376 = vmatpush.bf16.msra.mxu0 %v1254
  %1377 = vmatmul.bf16.gmra.mxu0 %v1326
  %v1378 = vpop.f32.mrf.mxu0
  %v1379 = vadd.f32 %v1360, %v1378
  %v1380 = vpop.f32.mrf.mxu0
  %v1381 = vadd.f32 %v1362, %v1380
  %1382 = vmatmul.bf16.gmra.mxu0 %v1329
  %v1383 = vpop.f32.mrf.mxu0
  %v1384 = vadd.f32 %v1365, %v1383
  %v1385 = vpop.f32.mrf.mxu0
  %v1386 = vadd.f32 %v1367, %v1385
  %1387 = vdwg.mxu0
  %1388 = vmatpush.bf16.msra.mxu0 %v1219
  %1389 = vmatpush.bf16.msra.mxu0 %v1215
  %1390 = vmatpush.bf16.msra.mxu0 %v1211
  %1391 = vmatpush.bf16.msra.mxu0 %v1207
  %1392 = vmatpush.bf16.msra.mxu0 %v1203
  %1393 = vmatpush.bf16.msra.mxu0 %v1199
  %1394 = vmatpush.bf16.msra.mxu0 %v1195
  %1395 = vmatpush.bf16.msra.mxu0 %v1191
  %1396 = vmatmul.bf16.gmra.mxu0 %v1314
  %v1397 = vpop.f32.mrf.mxu0
  %v1398 = vadd.f32 %v1277, %v1397
  %v1399 = vpop.f32.mrf.mxu0
  %v1400 = vadd.f32 %v1282, %v1399
  %1401 = vmatmul.bf16.gmra.mxu0 %v1317
  %v1402 = vpop.f32.mrf.mxu0
  %v1403 = vadd.f32 %v1287, %v1402
  %v1404 = vpop.f32.mrf.mxu0
  %v1405 = vadd.f32 %v1292, %v1404
  %1406 = vdwg.mxu0
  %1407 = vmatpush.bf16.msra.mxu0 %v1251
  %1408 = vmatpush.bf16.msra.mxu0 %v1247
  %1409 = vmatpush.bf16.msra.mxu0 %v1243
  %1410 = vmatpush.bf16.msra.mxu0 %v1239
  %1411 = vmatpush.bf16.msra.mxu0 %v1235
  %1412 = vmatpush.bf16.msra.mxu0 %v1231
  %1413 = vmatpush.bf16.msra.mxu0 %v1227
  %1414 = vmatpush.bf16.msra.mxu0 %v1223
  %1415 = vmatmul.bf16.gmra.mxu0 %v1315
  %v1416 = vpop.f32.mrf.mxu0
  %v1417 = vadd.f32 %v1398, %v1416
  %v1418 = vpop.f32.mrf.mxu0
  %v1419 = vadd.f32 %v1400, %v1418
  %1420 = vmatmul.bf16.gmra.mxu0 %v1318
  %v1421 = vpop.f32.mrf.mxu0
  %v1422 = vadd.f32 %v1403, %v1421
  %v1423 = vpop.f32.mrf.mxu0
  %v1424 = vadd.f32 %v1405, %v1423
  %1425 = vdwg.mxu0
  %1426 = vmatpush.bf16.msra.mxu0 0
  %1427 = vmatpush.bf16.msra.mxu0 0
  %1428 = vmatpush.bf16.msra.mxu0 0
  %1429 = vmatpush.bf16.msra.mxu0 0
  %1430 = vmatpush.bf16.msra.mxu0 0
  %1431 = vmatpush.bf16.msra.mxu0 0
  %1432 = vmatpush.bf16.msra.mxu0 %v1259
  %1433 = vmatpush.bf16.msra.mxu0 %v1255
  %1434 = vmatmul.bf16.gmra.mxu0 %v1326
  %v1435 = vpop.f32.mrf.mxu0
  %v1436 = vadd.f32 %v1417, %v1435
  %v1437 = vpop.f32.mrf.mxu0
  %v1438 = vadd.f32 %v1419, %v1437
  %1439 = vmatmul.bf16.gmra.mxu0 %v1329
  %v1440 = vpop.f32.mrf.mxu0
  %v1441 = vadd.f32 %v1422, %v1440
  %v1442 = vpop.f32.mrf.mxu0
  %v1443 = vadd.f32 %v1424, %v1442
  %1444 = vdwg.mxu0
  %1445 = vmatpush.bf16.msra.mxu0 %v1220
  %1446 = vmatpush.bf16.msra.mxu0 %v1216
  %1447 = vmatpush.bf16.msra.mxu0 %v1212
  %1448 = vmatpush.bf16.msra.mxu0 %v1208
  %1449 = vmatpush.bf16.msra.mxu0 %v1204
  %1450 = vmatpush.bf16.msra.mxu0 %v1200
  %1451 = vmatpush.bf16.msra.mxu0 %v1196
  %1452 = vmatpush.bf16.msra.mxu0 %v1192
  %1453 = vmatmul.bf16.gmra.mxu0 %v1314
  %v1454 = vpop.f32.mrf.mxu0
  %v1455 = vadd.f32 %v1277, %v1454
  %v1456 = vpop.f32.mrf.mxu0
  %v1457 = vadd.f32 %v1282, %v1456
  %1458 = vmatmul.bf16.gmra.mxu0 %v1317
  %v1459 = vpop.f32.mrf.mxu0
  %v1460 = vadd.f32 %v1287, %v1459
  %v1461 = vpop.f32.mrf.mxu0
  %v1462 = vadd.f32 %v1292, %v1461
  %1463 = vdwg.mxu0
  %1464 = vmatpush.bf16.msra.mxu0 %v1252
  %1465 = vmatpush.bf16.msra.mxu0 %v1248
  %1466 = vmatpush.bf16.msra.mxu0 %v1244
  %1467 = vmatpush.bf16.msra.mxu0 %v1240
  %1468 = vmatpush.bf16.msra.mxu0 %v1236
  %1469 = vmatpush.bf16.msra.mxu0 %v1232
  %1470 = vmatpush.bf16.msra.mxu0 %v1228
  %1471 = vmatpush.bf16.msra.mxu0 %v1224
  %1472 = vmatmul.bf16.gmra.mxu0 %v1315
  %v1473 = vpop.f32.mrf.mxu0
  %v1474 = vadd.f32 %v1455, %v1473
  %v1475 = vpop.f32.mrf.mxu0
  %v1476 = vadd.f32 %v1457, %v1475
  %1477 = vmatmul.bf16.gmra.mxu0 %v1318
  %v1478 = vpop.f32.mrf.mxu0
  %v1479 = vadd.f32 %v1460, %v1478
  %v1480 = vpop.f32.mrf.mxu0
  %v1481 = vadd.f32 %v1462, %v1480
  %1482 = vdwg.mxu0
  %1483 = vmatpush.bf16.msra.mxu0 0
  %1484 = vmatpush.bf16.msra.mxu0 0
  %1485 = vmatpush.bf16.msra.mxu0 0
  %1486 = vmatpush.bf16.msra.mxu0 0
  %1487 = vmatpush.bf16.msra.mxu0 0
  %1488 = vmatpush.bf16.msra.mxu0 0
  %1489 = vmatpush.bf16.msra.mxu0 %v1260
  %1490 = vmatpush.bf16.msra.mxu0 %v1256
  %1491 = vmatmul.bf16.gmra.mxu0 %v1326
  %v1492 = vpop.f32.mrf.mxu0
  %v1493 = vadd.f32 %v1474, %v1492
  %v1494 = vpop.f32.mrf.mxu0
  %v1495 = vadd.f32 %v1476, %v1494
  %1496 = vmatmul.bf16.gmra.mxu0 %v1329
  %v1497 = vpop.f32.mrf.mxu0
  %v1498 = vadd.f32 %v1479, %v1497
  %v1499 = vpop.f32.mrf.mxu0
  %v1500 = vadd.f32 %v1481, %v1499
  %1501 = vdwg.mxu0
  %1502 = vmatpush.bf16.msra.mxu0 %v1221
  %1503 = vmatpush.bf16.msra.mxu0 %v1217
  %1504 = vmatpush.bf16.msra.mxu0 %v1213
  %1505 = vmatpush.bf16.msra.mxu0 %v1209
  %1506 = vmatpush.bf16.msra.mxu0 %v1205
  %1507 = vmatpush.bf16.msra.mxu0 %v1201
  %1508 = vmatpush.bf16.msra.mxu0 %v1197
  %1509 = vmatpush.bf16.msra.mxu0 %v1193
  %1510 = vmatmul.bf16.gmra.mxu0 %v1314
  %v1511 = vpop.f32.mrf.mxu0
  %v1512 = vadd.f32 %v1277, %v1511
  %v1513 = vpop.f32.mrf.mxu0
  %v1514 = vadd.f32 %v1282, %v1513
  %1515 = vmatmul.bf16.gmra.mxu0 %v1317
  %v1516 = vpop.f32.mrf.mxu0
  %v1517 = vadd.f32 %v1287, %v1516
  %v1518 = vpop.f32.mrf.mxu0
  %v1519 = vadd.f32 %v1292, %v1518
  %1520 = vdwg.mxu0
  %1521 = vmatpush.bf16.msra.mxu0 %v1253
  %1522 = vmatpush.bf16.msra.mxu0 %v1249
  %1523 = vmatpush.bf16.msra.mxu0 %v1245
  %1524 = vmatpush.bf16.msra.mxu0 %v1241
  %1525 = vmatpush.bf16.msra.mxu0 %v1237
  %1526 = vmatpush.bf16.msra.mxu0 %v1233
  %1527 = vmatpush.bf16.msra.mxu0 %v1229
  %1528 = vmatpush.bf16.msra.mxu0 %v1225
  %1529 = vmatmul.bf16.gmra.mxu0 %v1315
  %v1530 = vpop.f32.mrf.mxu0
  %v1531 = vadd.f32 %v1512, %v1530
  %v1532 = vpop.f32.mrf.mxu0
  %v1533 = vadd.f32 %v1514, %v1532
  %1534 = vmatmul.bf16.gmra.mxu0 %v1318
  %v1535 = vpop.f32.mrf.mxu0
  %v1536 = vadd.f32 %v1517, %v1535
  %v1537 = vpop.f32.mrf.mxu0
  %v1538 = vadd.f32 %v1519, %v1537
  %1539 = vdwg.mxu0
  %1540 = vmatpush.bf16.msra.mxu0 0
  %1541 = vmatpush.bf16.msra.mxu0 0
  %1542 = vmatpush.bf16.msra.mxu0 0
  %1543 = vmatpush.bf16.msra.mxu0 0
  %1544 = vmatpush.bf16.msra.mxu0 0
  %1545 = vmatpush.bf16.msra.mxu0 0
  %1546 = vmatpush.bf16.msra.mxu0 %v1261
  %1547 = vmatpush.bf16.msra.mxu0 %v1257
  %1548 = vmatmul.bf16.gmra.mxu0 %v1326
  %v1549 = vpop.f32.mrf.mxu0
  %v1550 = vadd.f32 %v1531, %v1549
  %v1551 = vpop.f32.mrf.mxu0
  %v1552 = vadd.f32 %v1533, %v1551
  %1553 = vmatmul.bf16.gmra.mxu0 %v1329
  %v1554 = vpop.f32.mrf.mxu0
  %v1555 = vadd.f32 %v1536, %v1554
  %v1556 = vpop.f32.mrf.mxu0
  %v1557 = vadd.f32 %v1538, %v1556
  %1558 = vdwg.mxu0
  %v1559 = vxor.u32 %v1379, 2147483648
  %v1560 = vxor.u32 %v1436, 2147483648
  %v1561 = vxor.u32 %v1493, 2147483648
  %v1562 = vxor.u32 %v1550, 2147483648
  %v1563 = vxor.u32 %v1381, 2147483648
  %v1564 = vxor.u32 %v1438, 2147483648
  %v1565 = vxor.u32 %v1495, 2147483648
  %v1566 = vxor.u32 %v1552, 2147483648
  %v1567 = vxor.u32 %v1384, 2147483648
  %v1568 = vxor.u32 %v1441, 2147483648
  %v1569 = vxor.u32 %v1498, 2147483648
  %v1570 = vxor.u32 %v1555, 2147483648
  %v1571 = vxor.u32 %v1386, 2147483648
  %v1572 = vxor.u32 %v1443, 2147483648
  %v1573 = vxor.u32 %v1500, 2147483648
  %v1574 = vxor.u32 %v1557, 2147483648
  %v1575 = vmul.f32 %v1559, 1.442695
  %v1576 = vpow.pop %v1575
  %v1577 = vmul.f32 %v1560, 1.442695
  %v1578 = vpow.pop %v1577
  %v1579 = vmul.f32 %v1561, 1.442695
  %v1580 = vpow.pop %v1579
  %v1581 = vmul.f32 %v1562, 1.442695
  %v1582 = vpow.pop %v1581
  %v1583 = vmul.f32 %v1563, 1.442695
  %v1584 = vpow.pop %v1583
  %v1585 = vmul.f32 %v1564, 1.442695
  %v1586 = vpow.pop %v1585
  %v1587 = vmul.f32 %v1565, 1.442695
  %v1588 = vpow.pop %v1587
  %v1589 = vmul.f32 %v1566, 1.442695
  %v1590 = vpow.pop %v1589
  %v1591 = vmul.f32 %v1567, 1.442695
  %v1592 = vpow.pop %v1591
  %v1593 = vmul.f32 %v1568, 1.442695
  %v1594 = vpow.pop %v1593
  %v1595 = vmul.f32 %v1569, 1.442695
  %v1596 = vpow.pop %v1595
  %v1597 = vmul.f32 %v1570, 1.442695
  %v1598 = vpow.pop %v1597
  %v1599 = vmul.f32 %v1571, 1.442695
  %v1600 = vpow.pop %v1599
  %v1601 = vmul.f32 %v1572, 1.442695
  %v1602 = vpow.pop %v1601
  %v1603 = vmul.f32 %v1573, 1.442695
  %v1604 = vpow.pop %v1603
  %v1605 = vmul.f32 %v1574, 1.442695
  %v1606 = vpow.pop %v1605
  %v1607 = vadd.f32 %v1576, 1.0
  %v1608 = vadd.f32 %v1578, 1.0
  %v1609 = vadd.f32 %v1580, 1.0
  %v1610 = vadd.f32 %v1582, 1.0
  %v1611 = vadd.f32 %v1584, 1.0
  %v1612 = vadd.f32 %v1586, 1.0
  %v1613 = vadd.f32 %v1588, 1.0
  %v1614 = vadd.f32 %v1590, 1.0
  %v1615 = vadd.f32 %v1592, 1.0
  %v1616 = vadd.f32 %v1594, 1.0
  %v1617 = vadd.f32 %v1596, 1.0
  %v1618 = vadd.f32 %v1598, 1.0
  %v1619 = vadd.f32 %v1600, 1.0
  %v1620 = vadd.f32 %v1602, 1.0
  %v1621 = vadd.f32 %v1604, 1.0
  %v1622 = vadd.f32 %v1606, 1.0
  %v1623 = vrcp.pop %v1607
  %v1624 = vmul.f32 %v1607, %v1623
  %v1625 = vsub.f32 1.0, %v1624
  %v1626 = vmul.f32 %v1623, %v1625
  %v1627 = vadd.f32 %v1623, %v1626
  %vm1628 = vweird.f32 %v1607
  %vm1629 = vweird.f32 %v1623
  %vm1630 = vmor %vm1628, %vm1629
  %v1631 = vsel %vm1630, %v1623, %v1627
  %v1632 = vand.u32 2147483647, %v1607
  %vm1633 = vcmp.eq.f32.partialorder %v1632, 8.507059e+37
  %v1634 = vand.u32 %v1607, 2147483648
  %v1635 = vor.u32 1.1754944e-38, %v1634
  %v1636 = vsel %vm1633, %v1635, %v1631
  %v1637 = vmul.f32 1.0, %v1636
  %v1638 = vrcp.pop %v1608
  %v1639 = vmul.f32 %v1608, %v1638
  %v1640 = vsub.f32 1.0, %v1639
  %v1641 = vmul.f32 %v1638, %v1640
  %v1642 = vadd.f32 %v1638, %v1641
  %vm1643 = vweird.f32 %v1608
  %vm1644 = vweird.f32 %v1638
  %vm1645 = vmor %vm1643, %vm1644
  %v1646 = vsel %vm1645, %v1638, %v1642
  %v1647 = vand.u32 2147483647, %v1608
  %vm1648 = vcmp.eq.f32.partialorder %v1647, 8.507059e+37
  %v1649 = vand.u32 %v1608, 2147483648
  %v1650 = vor.u32 1.1754944e-38, %v1649
  %v1651 = vsel %vm1648, %v1650, %v1646
  %v1652 = vmul.f32 1.0, %v1651
  %v1653 = vrcp.pop %v1609
  %v1654 = vmul.f32 %v1609, %v1653
  %v1655 = vsub.f32 1.0, %v1654
  %v1656 = vmul.f32 %v1653, %v1655
  %v1657 = vadd.f32 %v1653, %v1656
  %vm1658 = vweird.f32 %v1609
  %vm1659 = vweird.f32 %v1653
  %vm1660 = vmor %vm1658, %vm1659
  %v1661 = vsel %vm1660, %v1653, %v1657
  %v1662 = vand.u32 2147483647, %v1609
  %vm1663 = vcmp.eq.f32.partialorder %v1662, 8.507059e+37
  %v1664 = vand.u32 %v1609, 2147483648
  %v1665 = vor.u32 1.1754944e-38, %v1664
  %v1666 = vsel %vm1663, %v1665, %v1661
  %v1667 = vmul.f32 1.0, %v1666
  %v1668 = vrcp.pop %v1610
  %v1669 = vmul.f32 %v1610, %v1668
  %v1670 = vsub.f32 1.0, %v1669
  %v1671 = vmul.f32 %v1668, %v1670
  %v1672 = vadd.f32 %v1668, %v1671
  %vm1673 = vweird.f32 %v1610
  %vm1674 = vweird.f32 %v1668
  %vm1675 = vmor %vm1673, %vm1674
  %v1676 = vsel %vm1675, %v1668, %v1672
  %v1677 = vand.u32 2147483647, %v1610
  %vm1678 = vcmp.eq.f32.partialorder %v1677, 8.507059e+37
  %v1679 = vand.u32 %v1610, 2147483648
  %v1680 = vor.u32 1.1754944e-38, %v1679
  %v1681 = vsel %vm1678, %v1680, %v1676
  %v1682 = vmul.f32 1.0, %v1681
  %v1683 = vrcp.pop %v1611
  %v1684 = vmul.f32 %v1611, %v1683
  %v1685 = vsub.f32 1.0, %v1684
  %v1686 = vmul.f32 %v1683, %v1685
  %v1687 = vadd.f32 %v1683, %v1686
  %vm1688 = vweird.f32 %v1611
  %vm1689 = vweird.f32 %v1683
  %vm1690 = vmor %vm1688, %vm1689
  %v1691 = vsel %vm1690, %v1683, %v1687
  %v1692 = vand.u32 2147483647, %v1611
  %vm1693 = vcmp.eq.f32.partialorder %v1692, 8.507059e+37
  %v1694 = vand.u32 %v1611, 2147483648
  %v1695 = vor.u32 1.1754944e-38, %v1694
  %v1696 = vsel %vm1693, %v1695, %v1691
  %v1697 = vmul.f32 1.0, %v1696
  %v1698 = vrcp.pop %v1612
  %v1699 = vmul.f32 %v1612, %v1698
  %v1700 = vsub.f32 1.0, %v1699
  %v1701 = vmul.f32 %v1698, %v1700
  %v1702 = vadd.f32 %v1698, %v1701
  %vm1703 = vweird.f32 %v1612
  %vm1704 = vweird.f32 %v1698
  %vm1705 = vmor %vm1703, %vm1704
  %v1706 = vsel %vm1705, %v1698, %v1702
  %v1707 = vand.u32 2147483647, %v1612
  %vm1708 = vcmp.eq.f32.partialorder %v1707, 8.507059e+37
  %v1709 = vand.u32 %v1612, 2147483648
  %v1710 = vor.u32 1.1754944e-38, %v1709
  %v1711 = vsel %vm1708, %v1710, %v1706
  %v1712 = vmul.f32 1.0, %v1711
  %v1713 = vrcp.pop %v1613
  %v1714 = vmul.f32 %v1613, %v1713
  %v1715 = vsub.f32 1.0, %v1714
  %v1716 = vmul.f32 %v1713, %v1715
  %v1717 = vadd.f32 %v1713, %v1716
  %vm1718 = vweird.f32 %v1613
  %vm1719 = vweird.f32 %v1713
  %vm1720 = vmor %vm1718, %vm1719
  %v1721 = vsel %vm1720, %v1713, %v1717
  %v1722 = vand.u32 2147483647, %v1613
  %vm1723 = vcmp.eq.f32.partialorder %v1722, 8.507059e+37
  %v1724 = vand.u32 %v1613, 2147483648
  %v1725 = vor.u32 1.1754944e-38, %v1724
  %v1726 = vsel %vm1723, %v1725, %v1721
  %v1727 = vmul.f32 1.0, %v1726
  %v1728 = vrcp.pop %v1614
  %v1729 = vmul.f32 %v1614, %v1728
  %v1730 = vsub.f32 1.0, %v1729
  %v1731 = vmul.f32 %v1728, %v1730
  %v1732 = vadd.f32 %v1728, %v1731
  %vm1733 = vweird.f32 %v1614
  %vm1734 = vweird.f32 %v1728
  %vm1735 = vmor %vm1733, %vm1734
  %v1736 = vsel %vm1735, %v1728, %v1732
  %v1737 = vand.u32 2147483647, %v1614
  %vm1738 = vcmp.eq.f32.partialorder %v1737, 8.507059e+37
  %v1739 = vand.u32 %v1614, 2147483648
  %v1740 = vor.u32 1.1754944e-38, %v1739
  %v1741 = vsel %vm1738, %v1740, %v1736
  %v1742 = vmul.f32 1.0, %v1741
  %v1743 = vrcp.pop %v1615
  %v1744 = vmul.f32 %v1615, %v1743
  %v1745 = vsub.f32 1.0, %v1744
  %v1746 = vmul.f32 %v1743, %v1745
  %v1747 = vadd.f32 %v1743, %v1746
  %vm1748 = vweird.f32 %v1615
  %vm1749 = vweird.f32 %v1743
  %vm1750 = vmor %vm1748, %vm1749
  %v1751 = vsel %vm1750, %v1743, %v1747
  %v1752 = vand.u32 2147483647, %v1615
  %vm1753 = vcmp.eq.f32.partialorder %v1752, 8.507059e+37
  %v1754 = vand.u32 %v1615, 2147483648
  %v1755 = vor.u32 1.1754944e-38, %v1754
  %v1756 = vsel %vm1753, %v1755, %v1751
  %v1757 = vmul.f32 1.0, %v1756
  %v1758 = vrcp.pop %v1616
  %v1759 = vmul.f32 %v1616, %v1758
  %v1760 = vsub.f32 1.0, %v1759
  %v1761 = vmul.f32 %v1758, %v1760
  %v1762 = vadd.f32 %v1758, %v1761
  %vm1763 = vweird.f32 %v1616
  %vm1764 = vweird.f32 %v1758
  %vm1765 = vmor %vm1763, %vm1764
  %v1766 = vsel %vm1765, %v1758, %v1762
  %v1767 = vand.u32 2147483647, %v1616
  %vm1768 = vcmp.eq.f32.partialorder %v1767, 8.507059e+37
  %v1769 = vand.u32 %v1616, 2147483648
  %v1770 = vor.u32 1.1754944e-38, %v1769
  %v1771 = vsel %vm1768, %v1770, %v1766
  %v1772 = vmul.f32 1.0, %v1771
  %v1773 = vrcp.pop %v1617
  %v1774 = vmul.f32 %v1617, %v1773
  %v1775 = vsub.f32 1.0, %v1774
  %v1776 = vmul.f32 %v1773, %v1775
  %v1777 = vadd.f32 %v1773, %v1776
  %vm1778 = vweird.f32 %v1617
  %vm1779 = vweird.f32 %v1773
  %vm1780 = vmor %vm1778, %vm1779
  %v1781 = vsel %vm1780, %v1773, %v1777
  %v1782 = vand.u32 2147483647, %v1617
  %vm1783 = vcmp.eq.f32.partialorder %v1782, 8.507059e+37
  %v1784 = vand.u32 %v1617, 2147483648
  %v1785 = vor.u32 1.1754944e-38, %v1784
  %v1786 = vsel %vm1783, %v1785, %v1781
  %v1787 = vmul.f32 1.0, %v1786
  %v1788 = vrcp.pop %v1618
  %v1789 = vmul.f32 %v1618, %v1788
  %v1790 = vsub.f32 1.0, %v1789
  %v1791 = vmul.f32 %v1788, %v1790
  %v1792 = vadd.f32 %v1788, %v1791
  %vm1793 = vweird.f32 %v1618
  %vm1794 = vweird.f32 %v1788
  %vm1795 = vmor %vm1793, %vm1794
  %v1796 = vsel %vm1795, %v1788, %v1792
  %v1797 = vand.u32 2147483647, %v1618
  %vm1798 = vcmp.eq.f32.partialorder %v1797, 8.507059e+37
  %v1799 = vand.u32 %v1618, 2147483648
  %v1800 = vor.u32 1.1754944e-38, %v1799
  %v1801 = vsel %vm1798, %v1800, %v1796
  %v1802 = vmul.f32 1.0, %v1801
  %v1803 = vrcp.pop %v1619
  %v1804 = vmul.f32 %v1619, %v1803
  %v1805 = vsub.f32 1.0, %v1804
  %v1806 = vmul.f32 %v1803, %v1805
  %v1807 = vadd.f32 %v1803, %v1806
  %vm1808 = vweird.f32 %v1619
  %vm1809 = vweird.f32 %v1803
  %vm1810 = vmor %vm1808, %vm1809
  %v1811 = vsel %vm1810, %v1803, %v1807
  %v1812 = vand.u32 2147483647, %v1619
  %vm1813 = vcmp.eq.f32.partialorder %v1812, 8.507059e+37
  %v1814 = vand.u32 %v1619, 2147483648
  %v1815 = vor.u32 1.1754944e-38, %v1814
  %v1816 = vsel %vm1813, %v1815, %v1811
  %v1817 = vmul.f32 1.0, %v1816
  %v1818 = vrcp.pop %v1620
  %v1819 = vmul.f32 %v1620, %v1818
  %v1820 = vsub.f32 1.0, %v1819
  %v1821 = vmul.f32 %v1818, %v1820
  %v1822 = vadd.f32 %v1818, %v1821
  %vm1823 = vweird.f32 %v1620
  %vm1824 = vweird.f32 %v1818
  %vm1825 = vmor %vm1823, %vm1824
  %v1826 = vsel %vm1825, %v1818, %v1822
  %v1827 = vand.u32 2147483647, %v1620
  %vm1828 = vcmp.eq.f32.partialorder %v1827, 8.507059e+37
  %v1829 = vand.u32 %v1620, 2147483648
  %v1830 = vor.u32 1.1754944e-38, %v1829
  %v1831 = vsel %vm1828, %v1830, %v1826
  %v1832 = vmul.f32 1.0, %v1831
  %v1833 = vrcp.pop %v1621
  %v1834 = vmul.f32 %v1621, %v1833
  %v1835 = vsub.f32 1.0, %v1834
  %v1836 = vmul.f32 %v1833, %v1835
  %v1837 = vadd.f32 %v1833, %v1836
  %vm1838 = vweird.f32 %v1621
  %vm1839 = vweird.f32 %v1833
  %vm1840 = vmor %vm1838, %vm1839
  %v1841 = vsel %vm1840, %v1833, %v1837
  %v1842 = vand.u32 2147483647, %v1621
  %vm1843 = vcmp.eq.f32.partialorder %v1842, 8.507059e+37
  %v1844 = vand.u32 %v1621, 2147483648
  %v1845 = vor.u32 1.1754944e-38, %v1844
  %v1846 = vsel %vm1843, %v1845, %v1841
  %v1847 = vmul.f32 1.0, %v1846
  %v1848 = vrcp.pop %v1622
  %v1849 = vmul.f32 %v1622, %v1848
  %v1850 = vsub.f32 1.0, %v1849
  %v1851 = vmul.f32 %v1848, %v1850
  %v1852 = vadd.f32 %v1848, %v1851
  %vm1853 = vweird.f32 %v1622
  %vm1854 = vweird.f32 %v1848
  %vm1855 = vmor %vm1853, %vm1854
  %v1856 = vsel %vm1855, %v1848, %v1852
  %v1857 = vand.u32 2147483647, %v1622
  %vm1858 = vcmp.eq.f32.partialorder %v1857, 8.507059e+37
  %v1859 = vand.u32 %v1622, 2147483648
  %v1860 = vor.u32 1.1754944e-38, %v1859
  %v1861 = vsel %vm1858, %v1860, %v1856
  %v1862 = vmul.f32 1.0, %v1861
  %v1863 = vmul.f32 %v1379, %v1637
  %v1864 = vmul.f32 %v1436, %v1652
  %v1865 = vmul.f32 %v1493, %v1667
  %v1866 = vmul.f32 %v1550, %v1682
  %v1867 = vmul.f32 %v1381, %v1697
  %v1868 = vmul.f32 %v1438, %v1712
  %v1869 = vmul.f32 %v1495, %v1727
  %v1870 = vmul.f32 %v1552, %v1742
  %v1871 = vmul.f32 %v1384, %v1757
  %v1872 = vmul.f32 %v1441, %v1772
  %v1873 = vmul.f32 %v1498, %v1787
  %v1874 = vmul.f32 %v1555, %v1802
  %v1875 = vmul.f32 %v1386, %v1817
  %v1876 = vmul.f32 %v1443, %v1832
  %v1877 = vmul.f32 %v1500, %v1847
  %v1878 = vmul.f32 %v1557, %v1862
  %1879 = vrot.lane.b32.xlu0 %v1863, 17
  %v1880 = vpop.permute.xlu0 %1879
  %1881 = vrot.lane.b32.xlu0 %v1867, 17
  %v1882 = vpop.permute.xlu0 %1881
  %1883 = vrot.lane.b32.xlu0 %v1871, 17
  %v1884 = vpop.permute.xlu0 %1883
  %1885 = vrot.lane.b32.xlu0 %v1875, 17
  %v1886 = vpop.permute.xlu0 %1885
  %1887 = vrot.lane.b32.xlu0 %v1864, 17
  %v1888 = vpop.permute.xlu0 %1887
  %1889 = vrot.lane.b32.xlu0 %v1868, 17
  %v1890 = vpop.permute.xlu0 %1889
  %1891 = vrot.lane.b32.xlu0 %v1872, 17
  %v1892 = vpop.permute.xlu0 %1891
  %1893 = vrot.lane.b32.xlu0 %v1876, 17
  %v1894 = vpop.permute.xlu0 %1893
  %1895 = vrot.lane.b32.xlu0 %v1865, 17
  %v1896 = vpop.permute.xlu0 %1895
  %1897 = vrot.lane.b32.xlu0 %v1869, 17
  %v1898 = vpop.permute.xlu0 %1897
  %1899 = vrot.lane.b32.xlu0 %v1873, 17
  %v1900 = vpop.permute.xlu0 %1899
  %1901 = vrot.lane.b32.xlu0 %v1877, 17
  %v1902 = vpop.permute.xlu0 %1901
  %1903 = vrot.lane.b32.xlu0 %v1866, 17
  %v1904 = vpop.permute.xlu0 %1903
  %1905 = vrot.lane.b32.xlu0 %v1870, 17
  %v1906 = vpop.permute.xlu0 %1905
  %1907 = vrot.lane.b32.xlu0 %v1874, 17
  %v1908 = vpop.permute.xlu0 %1907
  %1909 = vrot.lane.b32.xlu0 %v1878, 17
  %v1910 = vpop.permute.xlu0 %1909
  %v1911 = vsel %vm52, %v1896, %v1904
  %v1912 = vsel %vm52, %v1898, %v1906
  %v1913 = vsel %vm52, %v1900, %v1908
  %v1914 = vsel %vm52, %v1902, %v1910
  %v1915 = vsel %vm52, %v1888, %v1896
  %v1916 = vsel %vm52, %v1890, %v1898
  %v1917 = vsel %vm52, %v1892, %v1900
  %v1918 = vsel %vm52, %v1894, %v1902
  %v1919 = vsel %vm52, %v1880, %v1888
  %v1920 = vsel %vm52, %v1882, %v1890
  %v1921 = vsel %vm52, %v1884, %v1892
  %v1922 = vsel %vm52, %v1886, %v1894
  %v1923 = vsel %vm52, %v1904, %v1880
  %v1924 = vsel %vm52, %v1906, %v1882
  %v1925 = vsel %vm52, %v1908, %v1884
  %v1926 = vsel %vm52, %v1910, %v1886
  %v1927 = vmul.f32 %v1923, %v57
  %v1928 = vmul.f32 %v1919, %v58
  %v1929 = vmul.f32 %v1915, %v59
  %v1930 = vmul.f32 %v1911, %v60
  %v1931 = vmul.f32 %v1924, %v57
  %v1932 = vmul.f32 %v1920, %v58
  %v1933 = vmul.f32 %v1916, %v59
  %v1934 = vmul.f32 %v1912, %v60
  %v1935 = vmul.f32 %v1925, %v57
  %v1936 = vmul.f32 %v1921, %v58
  %v1937 = vmul.f32 %v1917, %v59
  %v1938 = vmul.f32 %v1913, %v60
  %v1939 = vmul.f32 %v1926, %v57
  %v1940 = vmul.f32 %v1922, %v58
  %v1941 = vmul.f32 %v1918, %v59
  %v1942 = vmul.f32 %v1914, %v60
  %1943 = vrot.lane.b32.xlu0 %v1863, 16
  %v1944 = vpop.permute.xlu0 %1943
  %1945 = vrot.lane.b32.xlu0 %v1867, 16
  %v1946 = vpop.permute.xlu0 %1945
  %1947 = vrot.lane.b32.xlu0 %v1871, 16
  %v1948 = vpop.permute.xlu0 %1947
  %1949 = vrot.lane.b32.xlu0 %v1875, 16
  %v1950 = vpop.permute.xlu0 %1949
  %1951 = vrot.lane.b32.xlu0 %v1864, 16
  %v1952 = vpop.permute.xlu0 %1951
  %1953 = vrot.lane.b32.xlu0 %v1868, 16
  %v1954 = vpop.permute.xlu0 %1953
  %1955 = vrot.lane.b32.xlu0 %v1872, 16
  %v1956 = vpop.permute.xlu0 %1955
  %1957 = vrot.lane.b32.xlu0 %v1876, 16
  %v1958 = vpop.permute.xlu0 %1957
  %1959 = vrot.lane.b32.xlu0 %v1865, 16
  %v1960 = vpop.permute.xlu0 %1959
  %1961 = vrot.lane.b32.xlu0 %v1869, 16
  %v1962 = vpop.permute.xlu0 %1961
  %1963 = vrot.lane.b32.xlu0 %v1873, 16
  %v1964 = vpop.permute.xlu0 %1963
  %1965 = vrot.lane.b32.xlu0 %v1877, 16
  %v1966 = vpop.permute.xlu0 %1965
  %1967 = vrot.lane.b32.xlu0 %v1866, 16
  %v1968 = vpop.permute.xlu0 %1967
  %1969 = vrot.lane.b32.xlu0 %v1870, 16
  %v1970 = vpop.permute.xlu0 %1969
  %1971 = vrot.lane.b32.xlu0 %v1874, 16
  %v1972 = vpop.permute.xlu0 %1971
  %1973 = vrot.lane.b32.xlu0 %v1878, 16
  %v1974 = vpop.permute.xlu0 %1973
  %v1975 = vsel %vm73, %v1960, %v1968
  %v1976 = vsel %vm73, %v1962, %v1970
  %v1977 = vsel %vm73, %v1964, %v1972
  %v1978 = vsel %vm73, %v1966, %v1974
  %v1979 = vsel %vm73, %v1952, %v1960
  %v1980 = vsel %vm73, %v1954, %v1962
  %v1981 = vsel %vm73, %v1956, %v1964
  %v1982 = vsel %vm73, %v1958, %v1966
  %v1983 = vsel %vm73, %v1944, %v1952
  %v1984 = vsel %vm73, %v1946, %v1954
  %v1985 = vsel %vm73, %v1948, %v1956
  %v1986 = vsel %vm73, %v1950, %v1958
  %v1987 = vsel %vm73, %v1968, %v1944
  %v1988 = vsel %vm73, %v1970, %v1946
  %v1989 = vsel %vm73, %v1972, %v1948
  %v1990 = vsel %vm73, %v1974, %v1950
  %v1991 = vmul.f32 %v1987, %v78
  %v1992 = vmul.f32 %v1983, %v79
  %v1993 = vmul.f32 %v1979, %v80
  %v1994 = vmul.f32 %v1975, %v81
  %v1995 = vmul.f32 %v1988, %v78
  %v1996 = vmul.f32 %v1984, %v79
  %v1997 = vmul.f32 %v1980, %v80
  %v1998 = vmul.f32 %v1976, %v81
  %v1999 = vmul.f32 %v1989, %v78
  %v2000 = vmul.f32 %v1985, %v79
  %v2001 = vmul.f32 %v1981, %v80
  %v2002 = vmul.f32 %v1977, %v81
  %v2003 = vmul.f32 %v1990, %v78
  %v2004 = vmul.f32 %v1986, %v79
  %v2005 = vmul.f32 %v1982, %v80
  %v2006 = vmul.f32 %v1978, %v81
  %2007 = vrot.lane.b32.xlu0 %v1863, 15
  %v2008 = vpop.permute.xlu0 %2007
  %2009 = vrot.lane.b32.xlu0 %v1867, 15
  %v2010 = vpop.permute.xlu0 %2009
  %2011 = vrot.lane.b32.xlu0 %v1871, 15
  %v2012 = vpop.permute.xlu0 %2011
  %2013 = vrot.lane.b32.xlu0 %v1875, 15
  %v2014 = vpop.permute.xlu0 %2013
  %2015 = vrot.lane.b32.xlu0 %v1864, 15
  %v2016 = vpop.permute.xlu0 %2015
  %2017 = vrot.lane.b32.xlu0 %v1868, 15
  %v2018 = vpop.permute.xlu0 %2017
  %2019 = vrot.lane.b32.xlu0 %v1872, 15
  %v2020 = vpop.permute.xlu0 %2019
  %2021 = vrot.lane.b32.xlu0 %v1876, 15
  %v2022 = vpop.permute.xlu0 %2021
  %2023 = vrot.lane.b32.xlu0 %v1865, 15
  %v2024 = vpop.permute.xlu0 %2023
  %2025 = vrot.lane.b32.xlu0 %v1869, 15
  %v2026 = vpop.permute.xlu0 %2025
  %2027 = vrot.lane.b32.xlu0 %v1873, 15
  %v2028 = vpop.permute.xlu0 %2027
  %2029 = vrot.lane.b32.xlu0 %v1877, 15
  %v2030 = vpop.permute.xlu0 %2029
  %2031 = vrot.lane.b32.xlu0 %v1866, 15
  %v2032 = vpop.permute.xlu0 %2031
  %2033 = vrot.lane.b32.xlu0 %v1870, 15
  %v2034 = vpop.permute.xlu0 %2033
  %2035 = vrot.lane.b32.xlu0 %v1874, 15
  %v2036 = vpop.permute.xlu0 %2035
  %2037 = vrot.lane.b32.xlu0 %v1878, 15
  %v2038 = vpop.permute.xlu0 %2037
  %v2039 = vsel %vm94, %v2024, %v2032
  %v2040 = vsel %vm94, %v2026, %v2034
  %v2041 = vsel %vm94, %v2028, %v2036
  %v2042 = vsel %vm94, %v2030, %v2038
  %v2043 = vsel %vm94, %v2016, %v2024
  %v2044 = vsel %vm94, %v2018, %v2026
  %v2045 = vsel %vm94, %v2020, %v2028
  %v2046 = vsel %vm94, %v2022, %v2030
  %v2047 = vsel %vm94, %v2008, %v2016
  %v2048 = vsel %vm94, %v2010, %v2018
  %v2049 = vsel %vm94, %v2012, %v2020
  %v2050 = vsel %vm94, %v2014, %v2022
  %v2051 = vsel %vm94, %v2032, %v2008
  %v2052 = vsel %vm94, %v2034, %v2010
  %v2053 = vsel %vm94, %v2036, %v2012
  %v2054 = vsel %vm94, %v2038, %v2014
  %v2055 = vmul.f32 %v2051, %v99
  %v2056 = vmul.f32 %v2047, %v100
  %v2057 = vmul.f32 %v2043, %v101
  %v2058 = vmul.f32 %v2039, %v102
  %v2059 = vmul.f32 %v2052, %v99
  %v2060 = vmul.f32 %v2048, %v100
  %v2061 = vmul.f32 %v2044, %v101
  %v2062 = vmul.f32 %v2040, %v102
  %v2063 = vmul.f32 %v2053, %v99
  %v2064 = vmul.f32 %v2049, %v100
  %v2065 = vmul.f32 %v2045, %v101
  %v2066 = vmul.f32 %v2041, %v102
  %v2067 = vmul.f32 %v2054, %v99
  %v2068 = vmul.f32 %v2050, %v100
  %v2069 = vmul.f32 %v2046, %v101
  %v2070 = vmul.f32 %v2042, %v102
  %2071 = vrot.lane.b32.xlu0 %v1863, 1
  %v2072 = vpop.permute.xlu0 %2071
  %2073 = vrot.lane.b32.xlu0 %v1867, 1
  %v2074 = vpop.permute.xlu0 %2073
  %2075 = vrot.lane.b32.xlu0 %v1871, 1
  %v2076 = vpop.permute.xlu0 %2075
  %2077 = vrot.lane.b32.xlu0 %v1875, 1
  %v2078 = vpop.permute.xlu0 %2077
  %2079 = vrot.lane.b32.xlu0 %v1864, 1
  %v2080 = vpop.permute.xlu0 %2079
  %2081 = vrot.lane.b32.xlu0 %v1868, 1
  %v2082 = vpop.permute.xlu0 %2081
  %2083 = vrot.lane.b32.xlu0 %v1872, 1
  %v2084 = vpop.permute.xlu0 %2083
  %2085 = vrot.lane.b32.xlu0 %v1876, 1
  %v2086 = vpop.permute.xlu0 %2085
  %2087 = vrot.lane.b32.xlu0 %v1865, 1
  %v2088 = vpop.permute.xlu0 %2087
  %2089 = vrot.lane.b32.xlu0 %v1869, 1
  %v2090 = vpop.permute.xlu0 %2089
  %2091 = vrot.lane.b32.xlu0 %v1873, 1
  %v2092 = vpop.permute.xlu0 %2091
  %2093 = vrot.lane.b32.xlu0 %v1877, 1
  %v2094 = vpop.permute.xlu0 %2093
  %2095 = vrot.lane.b32.xlu0 %v1866, 1
  %v2096 = vpop.permute.xlu0 %2095
  %2097 = vrot.lane.b32.xlu0 %v1870, 1
  %v2098 = vpop.permute.xlu0 %2097
  %2099 = vrot.lane.b32.xlu0 %v1874, 1
  %v2100 = vpop.permute.xlu0 %2099
  %2101 = vrot.lane.b32.xlu0 %v1878, 1
  %v2102 = vpop.permute.xlu0 %2101
  %v2103 = vsel %vm115, %v2088, %v2096
  %v2104 = vsel %vm115, %v2090, %v2098
  %v2105 = vsel %vm115, %v2092, %v2100
  %v2106 = vsel %vm115, %v2094, %v2102
  %v2107 = vsel %vm115, %v2080, %v2088
  %v2108 = vsel %vm115, %v2082, %v2090
  %v2109 = vsel %vm115, %v2084, %v2092
  %v2110 = vsel %vm115, %v2086, %v2094
  %v2111 = vsel %vm115, %v2072, %v2080
  %v2112 = vsel %vm115, %v2074, %v2082
  %v2113 = vsel %vm115, %v2076, %v2084
  %v2114 = vsel %vm115, %v2078, %v2086
  %v2115 = vsel %vm115, %v2096, %v2072
  %v2116 = vsel %vm115, %v2098, %v2074
  %v2117 = vsel %vm115, %v2100, %v2076
  %v2118 = vsel %vm115, %v2102, %v2078
  %v2119 = vmul.f32 %v2115, %v120
  %v2120 = vmul.f32 %v2111, %v121
  %v2121 = vmul.f32 %v2107, %v122
  %v2122 = vmul.f32 %v2103, %v123
  %v2123 = vmul.f32 %v2116, %v120
  %v2124 = vmul.f32 %v2112, %v121
  %v2125 = vmul.f32 %v2108, %v122
  %v2126 = vmul.f32 %v2104, %v123
  %v2127 = vmul.f32 %v2117, %v120
  %v2128 = vmul.f32 %v2113, %v121
  %v2129 = vmul.f32 %v2109, %v122
  %v2130 = vmul.f32 %v2105, %v123
  %v2131 = vmul.f32 %v2118, %v120
  %v2132 = vmul.f32 %v2114, %v121
  %v2133 = vmul.f32 %v2110, %v122
  %v2134 = vmul.f32 %v2106, %v123
  %2135 = vrot.lane.b32.xlu0 %v1863, 127
  %v2136 = vpop.permute.xlu0 %2135
  %2137 = vrot.lane.b32.xlu0 %v1867, 127
  %v2138 = vpop.permute.xlu0 %2137
  %2139 = vrot.lane.b32.xlu0 %v1871, 127
  %v2140 = vpop.permute.xlu0 %2139
  %2141 = vrot.lane.b32.xlu0 %v1875, 127
  %v2142 = vpop.permute.xlu0 %2141
  %2143 = vrot.lane.b32.xlu0 %v1864, 127
  %v2144 = vpop.permute.xlu0 %2143
  %2145 = vrot.lane.b32.xlu0 %v1868, 127
  %v2146 = vpop.permute.xlu0 %2145
  %2147 = vrot.lane.b32.xlu0 %v1872, 127
  %v2148 = vpop.permute.xlu0 %2147
  %2149 = vrot.lane.b32.xlu0 %v1876, 127
  %v2150 = vpop.permute.xlu0 %2149
  %2151 = vrot.lane.b32.xlu0 %v1865, 127
  %v2152 = vpop.permute.xlu0 %2151
  %2153 = vrot.lane.b32.xlu0 %v1869, 127
  %v2154 = vpop.permute.xlu0 %2153
  %2155 = vrot.lane.b32.xlu0 %v1873, 127
  %v2156 = vpop.permute.xlu0 %2155
  %2157 = vrot.lane.b32.xlu0 %v1877, 127
  %v2158 = vpop.permute.xlu0 %2157
  %2159 = vrot.lane.b32.xlu0 %v1866, 127
  %v2160 = vpop.permute.xlu0 %2159
  %2161 = vrot.lane.b32.xlu0 %v1870, 127
  %v2162 = vpop.permute.xlu0 %2161
  %2163 = vrot.lane.b32.xlu0 %v1874, 127
  %v2164 = vpop.permute.xlu0 %2163
  %2165 = vrot.lane.b32.xlu0 %v1878, 127
  %v2166 = vpop.permute.xlu0 %2165
  %v2167 = vsel %vm136, %v2152, %v2160
  %v2168 = vsel %vm136, %v2154, %v2162
  %v2169 = vsel %vm136, %v2156, %v2164
  %v2170 = vsel %vm136, %v2158, %v2166
  %v2171 = vsel %vm136, %v2144, %v2152
  %v2172 = vsel %vm136, %v2146, %v2154
  %v2173 = vsel %vm136, %v2148, %v2156
  %v2174 = vsel %vm136, %v2150, %v2158
  %v2175 = vsel %vm136, %v2136, %v2144
  %v2176 = vsel %vm136, %v2138, %v2146
  %v2177 = vsel %vm136, %v2140, %v2148
  %v2178 = vsel %vm136, %v2142, %v2150
  %v2179 = vsel %vm136, %v2160, %v2136
  %v2180 = vsel %vm136, %v2162, %v2138
  %v2181 = vsel %vm136, %v2164, %v2140
  %v2182 = vsel %vm136, %v2166, %v2142
  %v2183 = vmul.f32 %v2175, %v141
  %v2184 = vmul.f32 %v2171, %v142
  %v2185 = vmul.f32 %v2167, %v143
  %v2186 = vmul.f32 %v2179, %v144
  %v2187 = vmul.f32 %v2176, %v141
  %v2188 = vmul.f32 %v2172, %v142
  %v2189 = vmul.f32 %v2168, %v143
  %v2190 = vmul.f32 %v2180, %v144
  %v2191 = vmul.f32 %v2177, %v141
  %v2192 = vmul.f32 %v2173, %v142
  %v2193 = vmul.f32 %v2169, %v143
  %v2194 = vmul.f32 %v2181, %v144
  %v2195 = vmul.f32 %v2178, %v141
  %v2196 = vmul.f32 %v2174, %v142
  %v2197 = vmul.f32 %v2170, %v143
  %v2198 = vmul.f32 %v2182, %v144
  %2199 = vrot.lane.b32.xlu0 %v1863, 113
  %v2200 = vpop.permute.xlu0 %2199
  %2201 = vrot.lane.b32.xlu0 %v1867, 113
  %v2202 = vpop.permute.xlu0 %2201
  %2203 = vrot.lane.b32.xlu0 %v1871, 113
  %v2204 = vpop.permute.xlu0 %2203
  %2205 = vrot.lane.b32.xlu0 %v1875, 113
  %v2206 = vpop.permute.xlu0 %2205
  %2207 = vrot.lane.b32.xlu0 %v1864, 113
  %v2208 = vpop.permute.xlu0 %2207
  %2209 = vrot.lane.b32.xlu0 %v1868, 113
  %v2210 = vpop.permute.xlu0 %2209
  %2211 = vrot.lane.b32.xlu0 %v1872, 113
  %v2212 = vpop.permute.xlu0 %2211
  %2213 = vrot.lane.b32.xlu0 %v1876, 113
  %v2214 = vpop.permute.xlu0 %2213
  %2215 = vrot.lane.b32.xlu0 %v1865, 113
  %v2216 = vpop.permute.xlu0 %2215
  %2217 = vrot.lane.b32.xlu0 %v1869, 113
  %v2218 = vpop.permute.xlu0 %2217
  %2219 = vrot.lane.b32.xlu0 %v1873, 113
  %v2220 = vpop.permute.xlu0 %2219
  %2221 = vrot.lane.b32.xlu0 %v1877, 113
  %v2222 = vpop.permute.xlu0 %2221
  %2223 = vrot.lane.b32.xlu0 %v1866, 113
  %v2224 = vpop.permute.xlu0 %2223
  %2225 = vrot.lane.b32.xlu0 %v1870, 113
  %v2226 = vpop.permute.xlu0 %2225
  %2227 = vrot.lane.b32.xlu0 %v1874, 113
  %v2228 = vpop.permute.xlu0 %2227
  %2229 = vrot.lane.b32.xlu0 %v1878, 113
  %v2230 = vpop.permute.xlu0 %2229
  %v2231 = vsel %vm157, %v2216, %v2224
  %v2232 = vsel %vm157, %v2218, %v2226
  %v2233 = vsel %vm157, %v2220, %v2228
  %v2234 = vsel %vm157, %v2222, %v2230
  %v2235 = vsel %vm157, %v2208, %v2216
  %v2236 = vsel %vm157, %v2210, %v2218
  %v2237 = vsel %vm157, %v2212, %v2220
  %v2238 = vsel %vm157, %v2214, %v2222
  %v2239 = vsel %vm157, %v2200, %v2208
  %v2240 = vsel %vm157, %v2202, %v2210
  %v2241 = vsel %vm157, %v2204, %v2212
  %v2242 = vsel %vm157, %v2206, %v2214
  %v2243 = vsel %vm157, %v2224, %v2200
  %v2244 = vsel %vm157, %v2226, %v2202
  %v2245 = vsel %vm157, %v2228, %v2204
  %v2246 = vsel %vm157, %v2230, %v2206
  %v2247 = vmul.f32 %v2239, %v162
  %v2248 = vmul.f32 %v2235, %v163
  %v2249 = vmul.f32 %v2231, %v164
  %v2250 = vmul.f32 %v2243, %v165
  %v2251 = vmul.f32 %v2240, %v162
  %v2252 = vmul.f32 %v2236, %v163
  %v2253 = vmul.f32 %v2232, %v164
  %v2254 = vmul.f32 %v2244, %v165
  %v2255 = vmul.f32 %v2241, %v162
  %v2256 = vmul.f32 %v2237, %v163
  %v2257 = vmul.f32 %v2233, %v164
  %v2258 = vmul.f32 %v2245, %v165
  %v2259 = vmul.f32 %v2242, %v162
  %v2260 = vmul.f32 %v2238, %v163
  %v2261 = vmul.f32 %v2234, %v164
  %v2262 = vmul.f32 %v2246, %v165
  %2263 = vrot.lane.b32.xlu0 %v1863, 112
  %v2264 = vpop.permute.xlu0 %2263
  %2265 = vrot.lane.b32.xlu0 %v1867, 112
  %v2266 = vpop.permute.xlu0 %2265
  %2267 = vrot.lane.b32.xlu0 %v1871, 112
  %v2268 = vpop.permute.xlu0 %2267
  %2269 = vrot.lane.b32.xlu0 %v1875, 112
  %v2270 = vpop.permute.xlu0 %2269
  %2271 = vrot.lane.b32.xlu0 %v1864, 112
  %v2272 = vpop.permute.xlu0 %2271
  %2273 = vrot.lane.b32.xlu0 %v1868, 112
  %v2274 = vpop.permute.xlu0 %2273
  %2275 = vrot.lane.b32.xlu0 %v1872, 112
  %v2276 = vpop.permute.xlu0 %2275
  %2277 = vrot.lane.b32.xlu0 %v1876, 112
  %v2278 = vpop.permute.xlu0 %2277
  %2279 = vrot.lane.b32.xlu0 %v1865, 112
  %v2280 = vpop.permute.xlu0 %2279
  %2281 = vrot.lane.b32.xlu0 %v1869, 112
  %v2282 = vpop.permute.xlu0 %2281
  %2283 = vrot.lane.b32.xlu0 %v1873, 112
  %v2284 = vpop.permute.xlu0 %2283
  %2285 = vrot.lane.b32.xlu0 %v1877, 112
  %v2286 = vpop.permute.xlu0 %2285
  %2287 = vrot.lane.b32.xlu0 %v1866, 112
  %v2288 = vpop.permute.xlu0 %2287
  %2289 = vrot.lane.b32.xlu0 %v1870, 112
  %v2290 = vpop.permute.xlu0 %2289
  %2291 = vrot.lane.b32.xlu0 %v1874, 112
  %v2292 = vpop.permute.xlu0 %2291
  %2293 = vrot.lane.b32.xlu0 %v1878, 112
  %v2294 = vpop.permute.xlu0 %2293
  %v2295 = vsel %vm178, %v2280, %v2288
  %v2296 = vsel %vm178, %v2282, %v2290
  %v2297 = vsel %vm178, %v2284, %v2292
  %v2298 = vsel %vm178, %v2286, %v2294
  %v2299 = vsel %vm178, %v2272, %v2280
  %v2300 = vsel %vm178, %v2274, %v2282
  %v2301 = vsel %vm178, %v2276, %v2284
  %v2302 = vsel %vm178, %v2278, %v2286
  %v2303 = vsel %vm178, %v2264, %v2272
  %v2304 = vsel %vm178, %v2266, %v2274
  %v2305 = vsel %vm178, %v2268, %v2276
  %v2306 = vsel %vm178, %v2270, %v2278
  %v2307 = vsel %vm178, %v2288, %v2264
  %v2308 = vsel %vm178, %v2290, %v2266
  %v2309 = vsel %vm178, %v2292, %v2268
  %v2310 = vsel %vm178, %v2294, %v2270
  %v2311 = vmul.f32 %v2303, %v183
  %v2312 = vmul.f32 %v2299, %v184
  %v2313 = vmul.f32 %v2295, %v185
  %v2314 = vmul.f32 %v2307, %v186
  %v2315 = vmul.f32 %v2304, %v183
  %v2316 = vmul.f32 %v2300, %v184
  %v2317 = vmul.f32 %v2296, %v185
  %v2318 = vmul.f32 %v2308, %v186
  %v2319 = vmul.f32 %v2305, %v183
  %v2320 = vmul.f32 %v2301, %v184
  %v2321 = vmul.f32 %v2297, %v185
  %v2322 = vmul.f32 %v2309, %v186
  %v2323 = vmul.f32 %v2306, %v183
  %v2324 = vmul.f32 %v2302, %v184
  %v2325 = vmul.f32 %v2298, %v185
  %v2326 = vmul.f32 %v2310, %v186
  %2327 = vrot.lane.b32.xlu0 %v1863, 111
  %v2328 = vpop.permute.xlu0 %2327
  %2329 = vrot.lane.b32.xlu0 %v1867, 111
  %v2330 = vpop.permute.xlu0 %2329
  %2331 = vrot.lane.b32.xlu0 %v1871, 111
  %v2332 = vpop.permute.xlu0 %2331
  %2333 = vrot.lane.b32.xlu0 %v1875, 111
  %v2334 = vpop.permute.xlu0 %2333
  %2335 = vrot.lane.b32.xlu0 %v1864, 111
  %v2336 = vpop.permute.xlu0 %2335
  %2337 = vrot.lane.b32.xlu0 %v1868, 111
  %v2338 = vpop.permute.xlu0 %2337
  %2339 = vrot.lane.b32.xlu0 %v1872, 111
  %v2340 = vpop.permute.xlu0 %2339
  %2341 = vrot.lane.b32.xlu0 %v1876, 111
  %v2342 = vpop.permute.xlu0 %2341
  %2343 = vrot.lane.b32.xlu0 %v1865, 111
  %v2344 = vpop.permute.xlu0 %2343
  %2345 = vrot.lane.b32.xlu0 %v1869, 111
  %v2346 = vpop.permute.xlu0 %2345
  %2347 = vrot.lane.b32.xlu0 %v1873, 111
  %v2348 = vpop.permute.xlu0 %2347
  %2349 = vrot.lane.b32.xlu0 %v1877, 111
  %v2350 = vpop.permute.xlu0 %2349
  %2351 = vrot.lane.b32.xlu0 %v1866, 111
  %v2352 = vpop.permute.xlu0 %2351
  %2353 = vrot.lane.b32.xlu0 %v1870, 111
  %v2354 = vpop.permute.xlu0 %2353
  %2355 = vrot.lane.b32.xlu0 %v1874, 111
  %v2356 = vpop.permute.xlu0 %2355
  %2357 = vrot.lane.b32.xlu0 %v1878, 111
  %v2358 = vpop.permute.xlu0 %2357
  %v2359 = vsel %vm199, %v2344, %v2352
  %v2360 = vsel %vm199, %v2346, %v2354
  %v2361 = vsel %vm199, %v2348, %v2356
  %v2362 = vsel %vm199, %v2350, %v2358
  %v2363 = vsel %vm199, %v2336, %v2344
  %v2364 = vsel %vm199, %v2338, %v2346
  %v2365 = vsel %vm199, %v2340, %v2348
  %v2366 = vsel %vm199, %v2342, %v2350
  %v2367 = vsel %vm199, %v2328, %v2336
  %v2368 = vsel %vm199, %v2330, %v2338
  %v2369 = vsel %vm199, %v2332, %v2340
  %v2370 = vsel %vm199, %v2334, %v2342
  %v2371 = vsel %vm199, %v2352, %v2328
  %v2372 = vsel %vm199, %v2354, %v2330
  %v2373 = vsel %vm199, %v2356, %v2332
  %v2374 = vsel %vm199, %v2358, %v2334
  %v2375 = vmul.f32 %v2367, %v204
  %v2376 = vmul.f32 %v2363, %v205
  %v2377 = vmul.f32 %v2359, %v206
  %v2378 = vmul.f32 %v2371, %v207
  %v2379 = vmul.f32 %v2368, %v204
  %v2380 = vmul.f32 %v2364, %v205
  %v2381 = vmul.f32 %v2360, %v206
  %v2382 = vmul.f32 %v2372, %v207
  %v2383 = vmul.f32 %v2369, %v204
  %v2384 = vmul.f32 %v2365, %v205
  %v2385 = vmul.f32 %v2361, %v206
  %v2386 = vmul.f32 %v2373, %v207
  %v2387 = vmul.f32 %v2370, %v204
  %v2388 = vmul.f32 %v2366, %v205
  %v2389 = vmul.f32 %v2362, %v206
  %v2390 = vmul.f32 %v2374, %v207
  %v2391 = vpack.c.bf16 %v1931, %v1927
  %v2392 = vpack.c.bf16 %v1932, %v1928
  %v2393 = vpack.c.bf16 %v1933, %v1929
  %v2394 = vpack.c.bf16 %v1934, %v1930
  %v2395 = vpack.c.bf16 %v1939, %v1935
  %v2396 = vpack.c.bf16 %v1940, %v1936
  %v2397 = vpack.c.bf16 %v1941, %v1937
  %v2398 = vpack.c.bf16 %v1942, %v1938
  %v2399 = vpack.c.bf16 %v1995, %v1991
  %v2400 = vpack.c.bf16 %v1996, %v1992
  %v2401 = vpack.c.bf16 %v1997, %v1993
  %v2402 = vpack.c.bf16 %v1998, %v1994
  %v2403 = vpack.c.bf16 %v2003, %v1999
  %v2404 = vpack.c.bf16 %v2004, %v2000
  %v2405 = vpack.c.bf16 %v2005, %v2001
  %v2406 = vpack.c.bf16 %v2006, %v2002
  %v2407 = vpack.c.bf16 %v2059, %v2055
  %v2408 = vpack.c.bf16 %v2060, %v2056
  %v2409 = vpack.c.bf16 %v2061, %v2057
  %v2410 = vpack.c.bf16 %v2062, %v2058
  %v2411 = vpack.c.bf16 %v2067, %v2063
  %v2412 = vpack.c.bf16 %v2068, %v2064
  %v2413 = vpack.c.bf16 %v2069, %v2065
  %v2414 = vpack.c.bf16 %v2070, %v2066
  %v2415 = vpack.c.bf16 %v2123, %v2119
  %v2416 = vpack.c.bf16 %v2124, %v2120
  %v2417 = vpack.c.bf16 %v2125, %v2121
  %v2418 = vpack.c.bf16 %v2126, %v2122
  %v2419 = vpack.c.bf16 %v2131, %v2127
  %v2420 = vpack.c.bf16 %v2132, %v2128
  %v2421 = vpack.c.bf16 %v2133, %v2129
  %v2422 = vpack.c.bf16 %v2134, %v2130
  %v2423 = vpack.c.bf16 %v1867, %v1863
  %v2424 = vpack.c.bf16 %v1868, %v1864
  %v2425 = vpack.c.bf16 %v1869, %v1865
  %v2426 = vpack.c.bf16 %v1870, %v1866
  %v2427 = vpack.c.bf16 %v1875, %v1871
  %v2428 = vpack.c.bf16 %v1876, %v1872
  %v2429 = vpack.c.bf16 %v1877, %v1873
  %v2430 = vpack.c.bf16 %v1878, %v1874
  %v2431 = vpack.c.bf16 %v2187, %v2183
  %v2432 = vpack.c.bf16 %v2188, %v2184
  %v2433 = vpack.c.bf16 %v2189, %v2185
  %v2434 = vpack.c.bf16 %v2190, %v2186
  %v2435 = vpack.c.bf16 %v2195, %v2191
  %v2436 = vpack.c.bf16 %v2196, %v2192
  %v2437 = vpack.c.bf16 %v2197, %v2193
  %v2438 = vpack.c.bf16 %v2198, %v2194
  %v2439 = vpack.c.bf16 %v2251, %v2247
  %v2440 = vpack.c.bf16 %v2252, %v2248
  %v2441 = vpack.c.bf16 %v2253, %v2249
  %v2442 = vpack.c.bf16 %v2254, %v2250
  %v2443 = vpack.c.bf16 %v2259, %v2255
  %v2444 = vpack.c.bf16 %v2260, %v2256
  %v2445 = vpack.c.bf16 %v2261, %v2257
  %v2446 = vpack.c.bf16 %v2262, %v2258
  %v2447 = vpack.c.bf16 %v2315, %v2311
  %v2448 = vpack.c.bf16 %v2316, %v2312
  %v2449 = vpack.c.bf16 %v2317, %v2313
  %v2450 = vpack.c.bf16 %v2318, %v2314
  %v2451 = vpack.c.bf16 %v2323, %v2319
  %v2452 = vpack.c.bf16 %v2324, %v2320
  %v2453 = vpack.c.bf16 %v2325, %v2321
  %v2454 = vpack.c.bf16 %v2326, %v2322
  %v2455 = vpack.c.bf16 %v2379, %v2375
  %v2456 = vpack.c.bf16 %v2380, %v2376
  %v2457 = vpack.c.bf16 %v2381, %v2377
  %v2458 = vpack.c.bf16 %v2382, %v2378
  %v2459 = vpack.c.bf16 %v2387, %v2383
  %v2460 = vpack.c.bf16 %v2388, %v2384
  %v2461 = vpack.c.bf16 %v2389, %v2385
  %v2462 = vpack.c.bf16 %v2390, %v2386
  %v2463 = vld [vmem:[%s5] sm:$0xff]
  %v2464 = vld [vmem:[%s5 + $0x8] sm:$0xf]
  %v2465 = vld [vmem:[%s7] sm:$0xff]
  %2467 = vset.pattern.permute.xlu0 0
  %2468 = vperm.xlu0 %2467, %v2465
  %v2469 = vpop.permute.xlu0 %2468
  %v2473 = vunpack.c.l.b16 %v2463
  %v2474 = vunpack.c.h.b16 %v2463
  %v2475 = vunpack.c.l.b16 %v2464
  %v2476 = vpack.c.b16 %v2473, %v2473
  %v2477 = vpack.c.b16 %v2474, %v2474
  %v2478 = vpack.c.b16 %v2475, %v2475
  %v2482 = vsel %vm1324, %v2478, 0
  %2484 = vmatpush.bf16.msra.mxu0 %v2419
  %2485 = vmatpush.bf16.msra.mxu0 %v2415
  %2486 = vmatpush.bf16.msra.mxu0 %v2411
  %2487 = vmatpush.bf16.msra.mxu0 %v2407
  %2488 = vmatpush.bf16.msra.mxu0 %v2403
  %2489 = vmatpush.bf16.msra.mxu0 %v2399
  %2490 = vmatpush.bf16.msra.mxu0 %v2395
  %2491 = vmatpush.bf16.msra.mxu0 %v2391
  %2492 = vmatmul.bf16.gmra.mxu0 %v2476
  %v2493 = vpop.f32.mrf.mxu0
  %v2494 = vadd.f32 %v2469, %v2493
  %v2495 = vpop.f32.mrf.mxu0
  %2496 = vdwg.mxu0
  %2497 = vmatpush.bf16.msra.mxu0 %v2451
  %2498 = vmatpush.bf16.msra.mxu0 %v2447
  %2499 = vmatpush.bf16.msra.mxu0 %v2443
  %2500 = vmatpush.bf16.msra.mxu0 %v2439
  %2501 = vmatpush.bf16.msra.mxu0 %v2435
  %2502 = vmatpush.bf16.msra.mxu0 %v2431
  %2503 = vmatpush.bf16.msra.mxu0 %v2427
  %2504 = vmatpush.bf16.msra.mxu0 %v2423
  %2505 = vmatmul.bf16.gmra.mxu0 %v2477
  %v2506 = vpop.f32.mrf.mxu0
  %v2507 = vadd.f32 %v2494, %v2506
  %v2508 = vpop.f32.mrf.mxu0
  %2509 = vdwg.mxu0
  %2510 = vmatpush.bf16.msra.mxu0 0
  %2511 = vmatpush.bf16.msra.mxu0 0
  %2512 = vmatpush.bf16.msra.mxu0 0
  %2513 = vmatpush.bf16.msra.mxu0 0
  %2514 = vmatpush.bf16.msra.mxu0 0
  %2515 = vmatpush.bf16.msra.mxu0 0
  %2516 = vmatpush.bf16.msra.mxu0 %v2459
  %2517 = vmatpush.bf16.msra.mxu0 %v2455
  %2518 = vmatmul.bf16.gmra.mxu0 %v2482
  %v2519 = vpop.f32.mrf.mxu0
  %v2520 = vadd.f32 %v2507, %v2519
  %v2521 = vpop.f32.mrf.mxu0
  %2522 = vdwg.mxu0
  %2523 = vmatpush.bf16.msra.mxu0 %v2420
  %2524 = vmatpush.bf16.msra.mxu0 %v2416
  %2525 = vmatpush.bf16.msra.mxu0 %v2412
  %2526 = vmatpush.bf16.msra.mxu0 %v2408
  %2527 = vmatpush.bf16.msra.mxu0 %v2404
  %2528 = vmatpush.bf16.msra.mxu0 %v2400
  %2529 = vmatpush.bf16.msra.mxu0 %v2396
  %2530 = vmatpush.bf16.msra.mxu0 %v2392
  %2531 = vmatmul.bf16.gmra.mxu0 %v2476
  %v2532 = vpop.f32.mrf.mxu0
  %v2533 = vadd.f32 %v2469, %v2532
  %v2534 = vpop.f32.mrf.mxu0
  %2535 = vdwg.mxu0
  %2536 = vmatpush.bf16.msra.mxu0 %v2452
  %2537 = vmatpush.bf16.msra.mxu0 %v2448
  %2538 = vmatpush.bf16.msra.mxu0 %v2444
  %2539 = vmatpush.bf16.msra.mxu0 %v2440
  %2540 = vmatpush.bf16.msra.mxu0 %v2436
  %2541 = vmatpush.bf16.msra.mxu0 %v2432
  %2542 = vmatpush.bf16.msra.mxu0 %v2428
  %2543 = vmatpush.bf16.msra.mxu0 %v2424
  %2544 = vmatmul.bf16.gmra.mxu0 %v2477
  %v2545 = vpop.f32.mrf.mxu0
  %v2546 = vadd.f32 %v2533, %v2545
  %v2547 = vpop.f32.mrf.mxu0
  %2548 = vdwg.mxu0
  %2549 = vmatpush.bf16.msra.mxu0 0
  %2550 = vmatpush.bf16.msra.mxu0 0
  %2551 = vmatpush.bf16.msra.mxu0 0
  %2552 = vmatpush.bf16.msra.mxu0 0
  %2553 = vmatpush.bf16.msra.mxu0 0
  %2554 = vmatpush.bf16.msra.mxu0 0
  %2555 = vmatpush.bf16.msra.mxu0 %v2460
  %2556 = vmatpush.bf16.msra.mxu0 %v2456
  %2557 = vmatmul.bf16.gmra.mxu0 %v2482
  %v2558 = vpop.f32.mrf.mxu0
  %v2559 = vadd.f32 %v2546, %v2558
  %v2560 = vpop.f32.mrf.mxu0
  %2561 = vdwg.mxu0
  %2562 = vmatpush.bf16.msra.mxu0 %v2421
  %2563 = vmatpush.bf16.msra.mxu0 %v2417
  %2564 = vmatpush.bf16.msra.mxu0 %v2413
  %2565 = vmatpush.bf16.msra.mxu0 %v2409
  %2566 = vmatpush.bf16.msra.mxu0 %v2405
  %2567 = vmatpush.bf16.msra.mxu0 %v2401
  %2568 = vmatpush.bf16.msra.mxu0 %v2397
  %2569 = vmatpush.bf16.msra.mxu0 %v2393
  %2570 = vmatmul.bf16.gmra.mxu0 %v2476
  %v2571 = vpop.f32.mrf.mxu0
  %v2572 = vadd.f32 %v2469, %v2571
  %v2573 = vpop.f32.mrf.mxu0
  %2574 = vdwg.mxu0
  %2575 = vmatpush.bf16.msra.mxu0 %v2453
  %2576 = vmatpush.bf16.msra.mxu0 %v2449
  %2577 = vmatpush.bf16.msra.mxu0 %v2445
  %2578 = vmatpush.bf16.msra.mxu0 %v2441
  %2579 = vmatpush.bf16.msra.mxu0 %v2437
  %2580 = vmatpush.bf16.msra.mxu0 %v2433
  %2581 = vmatpush.bf16.msra.mxu0 %v2429
  %2582 = vmatpush.bf16.msra.mxu0 %v2425
  %2583 = vmatmul.bf16.gmra.mxu0 %v2477
  %v2584 = vpop.f32.mrf.mxu0
  %v2585 = vadd.f32 %v2572, %v2584
  %v2586 = vpop.f32.mrf.mxu0
  %2587 = vdwg.mxu0
  %2588 = vmatpush.bf16.msra.mxu0 0
  %2589 = vmatpush.bf16.msra.mxu0 0
  %2590 = vmatpush.bf16.msra.mxu0 0
  %2591 = vmatpush.bf16.msra.mxu0 0
  %2592 = vmatpush.bf16.msra.mxu0 0
  %2593 = vmatpush.bf16.msra.mxu0 0
  %2594 = vmatpush.bf16.msra.mxu0 %v2461
  %2595 = vmatpush.bf16.msra.mxu0 %v2457
  %2596 = vmatmul.bf16.gmra.mxu0 %v2482
  %v2597 = vpop.f32.mrf.mxu0
  %v2598 = vadd.f32 %v2585, %v2597
  %v2599 = vpop.f32.mrf.mxu0
  %2600 = vdwg.mxu0
  %2601 = vmatpush.bf16.msra.mxu0 %v2422
  %2602 = vmatpush.bf16.msra.mxu0 %v2418
  %2603 = vmatpush.bf16.msra.mxu0 %v2414
  %2604 = vmatpush.bf16.msra.mxu0 %v2410
  %2605 = vmatpush.bf16.msra.mxu0 %v2406
  %2606 = vmatpush.bf16.msra.mxu0 %v2402
  %2607 = vmatpush.bf16.msra.mxu0 %v2398
  %2608 = vmatpush.bf16.msra.mxu0 %v2394
  %2609 = vmatmul.bf16.gmra.mxu0 %v2476
  %v2610 = vpop.f32.mrf.mxu0
  %v2611 = vadd.f32 %v2469, %v2610
  %v2612 = vpop.f32.mrf.mxu0
  %2613 = vdwg.mxu0
  %2614 = vmatpush.bf16.msra.mxu0 %v2454
  %2615 = vmatpush.bf16.msra.mxu0 %v2450
  %2616 = vmatpush.bf16.msra.mxu0 %v2446
  %2617 = vmatpush.bf16.msra.mxu0 %v2442
  %2618 = vmatpush.bf16.msra.mxu0 %v2438
  %2619 = vmatpush.bf16.msra.mxu0 %v2434
  %2620 = vmatpush.bf16.msra.mxu0 %v2430
  %2621 = vmatpush.bf16.msra.mxu0 %v2426
  %2622 = vmatmul.bf16.gmra.mxu0 %v2477
  %v2623 = vpop.f32.mrf.mxu0
  %v2624 = vadd.f32 %v2611, %v2623
  %v2625 = vpop.f32.mrf.mxu0
  %2626 = vdwg.mxu0
  %2627 = vmatpush.bf16.msra.mxu0 0
  %2628 = vmatpush.bf16.msra.mxu0 0
  %2629 = vmatpush.bf16.msra.mxu0 0
  %2630 = vmatpush.bf16.msra.mxu0 0
  %2631 = vmatpush.bf16.msra.mxu0 0
  %2632 = vmatpush.bf16.msra.mxu0 0
  %2633 = vmatpush.bf16.msra.mxu0 %v2462
  %2634 = vmatpush.bf16.msra.mxu0 %v2458
  %2635 = vmatmul.bf16.gmra.mxu0 %v2482
  %v2636 = vpop.f32.mrf.mxu0
  %v2637 = vadd.f32 %v2624, %v2636
  %v2638 = vpop.f32.mrf.mxu0
  %2639 = vdwg.mxu0
  %2640 = vst [vmem:[%s8] sm:$0xff] %v2520
  %2641 = vst [vmem:[%s8 + $0x8] sm:$0xff] %v2559
  %2642 = vst [vmem:[%s8 + $0x10] sm:$0xff] %v2598
  %2643 = vst [vmem:[%s8 + $0x18] sm:$0xff] %v2637
  // Predicated region
  $region34: #{diffusion_model_forward.1} parent=0 // pred_check
    _
  $region35: #{diffusion_model_forward.1} parent=0 // pred_check_branch
    %2645 = sbr.rel (0) target = $region37
  $region36: #{diffusion_model_forward.1} parent=0 // pred_region
    _
  $region37: #{diffusion_model_forward.1} parent=0 // pred_fallthru
    _
  // Predicated region
  $region38: #{diffusion_model_forward.1} parent=0 // pred_check
    _
  $region39: #{diffusion_model_forward.1} parent=0 // pred_check_branch
    %2647 = sbr.rel (0) target = $region41
  $region40: #{diffusion_model_forward.1} parent=0 // pred_region
    _
  $region41: #{diffusion_model_forward.1} parent=0 // pred_fallthru
    _

</llo_original>
